<compile_context>
chip_gen: v7x
topology: tpu7x:2x2x1
jax: 0.10.0
libtpu: 0.0.40
codegen_flags: <defaults>
</compile_context>

<pallas_src>
import functools
import math

import jax
import jax.numpy as jnp
from jax import lax
from jax.experimental import pallas as pl
from jax.experimental.pallas import tpu as pltpu


def _mha_kernel(q_ref, k_ref, v_ref,
                wq_ref, bq_ref, wk_ref, bk_ref, wv_ref, bv_ref,
                out_ref, *, head_number, dk, dv, inv_scale, mxu_dtype):
    # Ref shapes (leading batch dim squeezed via block_shape=None):
    #   q/k/v : (S, D)
    #   wq/wk : (D, H*dk)   wv : (D, H*dv)
    #   bq/bk : (1, H*dk)   bv : (1, H*dv)
    #   out   : (S, H*dv)
    q = q_ref[...].astype(mxu_dtype)
    k = k_ref[...].astype(mxu_dtype)
    v = v_ref[...].astype(mxu_dtype)
    wq = wq_ref[...].astype(mxu_dtype)
    wk = wk_ref[...].astype(mxu_dtype)
    wv = wv_ref[...].astype(mxu_dtype)

    # Fused-head projections: one MXU matmul per input, f32 accumulation.
    # Bias broadcast hoisted: added once to the fused (S, H*dk) slab.
    qp = jnp.dot(q, wq, preferred_element_type=jnp.float32) + bq_ref[...]   # (S, H*dk)
    kp = jnp.dot(k, wk, preferred_element_type=jnp.float32) + bk_ref[...]   # (S, H*dk)
    vp = jnp.dot(v, wv, preferred_element_type=jnp.float32) + bv_ref[...]   # (S, H*dv)

    # Pre-scale Q (touches S*H*dk elems) instead of dividing the (S, S) scores.
    qp = qp * inv_scale

    head_outs = []
    for h in range(head_number):                     # static, unrolled over heads
        qh = qp[:, h * dk:(h + 1) * dk].astype(mxu_dtype)      # (S, dk)
        kh = kp[:, h * dk:(h + 1) * dk].astype(mxu_dtype)      # (S, dk)
        vh = vp[:, h * dv:(h + 1) * dv].astype(mxu_dtype)      # (S, dv)

        # Scores: contract over dk directly (transposed-operand MXU path,
        # no explicit kh.T / XLU vxpose).
        e = lax.dot_general(qh, kh,
                            dimension_numbers=(((1,), (1,)), ((), ())),
                            preferred_element_type=jnp.float32)            # (S, S)

        # Numerically-stable softmax, kept in f32; reciprocal goes to the EUP.
        m = jnp.max(e, axis=-1, keepdims=True)
        p = jnp.exp(e - m)
        denom = jnp.sum(p, axis=-1, keepdims=True)
        attn = p * pl.reciprocal(denom, approx=True)

        head_outs.append(
            jnp.dot(attn.astype(mxu_dtype), vh,
                    preferred_element_type=jnp.float32))                   # (S, dv)

    # Single lane-dense store (S, H*dv) -- already the PyTorch output layout,
    # so no post-kernel transpose is needed.
    out_ref[...] = jnp.concatenate(head_outs, axis=-1).astype(out_ref.dtype)
    # TODO(synk): dropout is p=0 in this config (identity); stochastic dropout
    # would use pltpu.prng_seed / pltpu.prng_random_bits.


def multi_head_attention(q, k, v, params, *, head_number, dk, dv,
                         scaling_factor, mxu_dtype=jnp.float32):
    """q, k, v: [B, S, D] float32.  Returns [B, S, head_number*dv]."""
    B, S, D = q.shape
    H = head_number

    wq = params["wq"]                       # (D, H*dk)  == torch weight.T
    wk = params["wk"]                       # (D, H*dk)
    wv = params["wv"]                       # (D, H*dv)
    bq = params["bq"].reshape(1, H * dk)
    bk = params["bk"].reshape(1, H * dk)
    bv = params["bv"].reshape(1, H * dv)

    kernel = functools.partial(
        _mha_kernel, head_number=H, dk=dk, dv=dv,
        inv_scale=float(1.0 / scaling_factor), mxu_dtype=mxu_dtype)

    return pl.pallas_call(
        kernel,
        out_shape=jax.ShapeDtypeStruct((B, S, H * dv), jnp.float32),
        grid_spec=pltpu.PrefetchScalarGridSpec(
            num_scalar_prefetch=0,
            grid=(B,),
            in_specs=[
                pl.BlockSpec((None, S, D), lambda b: (b, 0, 0)),     # q (squeezed)
                pl.BlockSpec((None, S, D), lambda b: (b, 0, 0)),     # k
                pl.BlockSpec((None, S, D), lambda b: (b, 0, 0)),     # v
                pl.BlockSpec((D, H * dk), lambda b: (0, 0)),         # wq (fused heads)
                pl.BlockSpec((1, H * dk), lambda b: (0, 0)),         # bq
                pl.BlockSpec((D, H * dk), lambda b: (0, 0)),         # wk
                pl.BlockSpec((1, H * dk), lambda b: (0, 0)),         # bk
                pl.BlockSpec((D, H * dv), lambda b: (0, 0)),         # wv
                pl.BlockSpec((1, H * dv), lambda b: (0, 0)),         # bv
            ],
            # Lane-dense output block: last dim H*dv, final layout [B, S, H*dv].
            out_specs=pl.BlockSpec((None, S, H * dv), lambda b: (b, 0, 0)),
        ),
        compiler_params=pltpu.CompilerParams(
            dimension_semantics=("parallel",)),   # B=2 steps -> both v7x TCs
    )(q, k, v, wq, bq, wk, bk, wv, bv)


def _reference(q, k, v, params, *, head_number, dk, dv, scaling_factor):
    """Plain-JAX replica of the PyTorch forward, for correctness check."""
    B, S, D = q.shape
    H = head_number

    def proj(x, w, b, d):
        y = x @ w + b                                   # (B, S, H*d)
        return y.reshape(B, S, H, d).transpose(0, 2, 1, 3)

    qt = proj(q, params["wq"], params["bq"], dk)
    kt = proj(k, params["wk"], params["bk"], dk)
    vt = proj(v, params["wv"], params["bv"], dv)
    e = jnp.einsum("bhqd,bhkd->bhqk", qt, kt) / scaling_factor
    a = jax.nn.softmax(e, axis=-1)
    o = jnp.einsum("bhqk,bhkd->bhqd", a, vt).transpose(0, 2, 1, 3)
    return o.reshape(B, S, H * dv)


if __name__ == "__main__":
    # Module hyperparameters (small, consistent with the forward pass).
    B, S, D = 2, 8, 32
    H, dk, dv = 4, 16, 16
    scaling_factor = math.sqrt(dk)

    key = jax.random.PRNGKey(0)
    k_q, k_k, k_v, k_wq, k_wk, k_wv, k_bq, k_bk, k_bv = jax.random.split(key, 9)

    q = jax.random.normal(k_q, (B, S, D), dtype=jnp.float32)
    k = jax.random.normal(k_k, (B, S, D), dtype=jnp.float32)
    v = jax.random.normal(k_v, (B, S, D), dtype=jnp.float32)

    # Deterministic parameter init (nn.Linear-style uniform bound 1/sqrt(fan_in)).
    bound = 1.0 / math.sqrt(D)
    params = {
        # stored as W.T relative to torch (so projection is x @ W + b)
        "wq": jax.random.uniform(k_wq, (D, H * dk), minval=-bound, maxval=bound),
        "wk": jax.random.uniform(k_wk, (D, H * dk), minval=-bound, maxval=bound),
        "wv": jax.random.uniform(k_wv, (D, H * dv), minval=-bound, maxval=bound),
        "bq": jax.random.uniform(k_bq, (H * dk,), minval=-bound, maxval=bound),
        "bk": jax.random.uniform(k_bk, (H * dk,), minval=-bound, maxval=bound),
        "bv": jax.random.uniform(k_bv, (H * dv,), minval=-bound, maxval=bound),
    }

    ref = _reference(q, k, v, params, head_number=H, dk=dk, dv=dv,
                     scaling_factor=scaling_factor)

    # f32 MXU operands (exact semantics; v5e-friendly).  Tolerance accounts for
    # the EUP approximate reciprocal used in the softmax normalization.
    out_f32 = multi_head_attention(q, k, v, params, head_number=H, dk=dk, dv=dv,
                                   scaling_factor=scaling_factor)
    out_f32 = jax.block_until_ready(out_f32)
    assert out_f32.shape == (B, S, H * dv)
    assert jnp.allclose(out_f32, ref, atol=1e-2, rtol=1e-2), "f32 mismatch vs reference"

    # bf16 MXU operands (v6e/v7x fast path; softmax and accumulation stay f32).
    out_bf16 = multi_head_attention(q, k, v, params, head_number=H, dk=dk, dv=dv,
                                    scaling_factor=scaling_factor,
                                    mxu_dtype=jnp.bfloat16)
    out_bf16 = jax.block_until_ready(out_bf16)
    assert jnp.allclose(out_bf16, ref, atol=5e-2, rtol=5e-2), "bf16 mismatch vs reference"

    print("KERNEL_OK")
</pallas_src>

<mosaic_0001>
module attributes {stable_mosaic.version = 11 : i64} {
  func.func @_mha_kernel(%arg0: i32, %arg1: memref<1x8x32xf32, #tpu.memory_space<vmem>>, %arg2: memref<1x8x32xf32, #tpu.memory_space<vmem>>, %arg3: memref<1x8x32xf32, #tpu.memory_space<vmem>>, %arg4: memref<32x64xf32, #tpu.memory_space<vmem>>, %arg5: memref<1x64xf32, #tpu.memory_space<vmem>>, %arg6: memref<32x64xf32, #tpu.memory_space<vmem>>, %arg7: memref<1x64xf32, #tpu.memory_space<vmem>>, %arg8: memref<32x64xf32, #tpu.memory_space<vmem>>, %arg9: memref<1x64xf32, #tpu.memory_space<vmem>>, %arg10: memref<1x8x64xf32, #tpu.memory_space<vmem>>) attributes {dimension_semantics = [#tpu.dimension_semantics<parallel>], iteration_bounds = array<i64: 2>, scalar_prefetch = 0 : i64, scratch_operands = 0 : i64, tpu.core_type = #tpu.core_type<tc>, window_params = [{transform_indices = @transform_0, window_bounds = array<i64: 1, 8, 32>}, {transform_indices = @transform_1, window_bounds = array<i64: 1, 8, 32>}, {transform_indices = @transform_2, window_bounds = array<i64: 1, 8, 32>}, {pipeline_mode = #tpu.pipeline_mode<synchronous>, transform_indices = @transform_3, window_bounds = array<i64: 32, 64>}, {pipeline_mode = #tpu.pipeline_mode<synchronous>, transform_indices = @transform_4, window_bounds = array<i64: 1, 64>}, {pipeline_mode = #tpu.pipeline_mode<synchronous>, transform_indices = @transform_5, window_bounds = array<i64: 32, 64>}, {pipeline_mode = #tpu.pipeline_mode<synchronous>, transform_indices = @transform_6, window_bounds = array<i64: 1, 64>}, {pipeline_mode = #tpu.pipeline_mode<synchronous>, transform_indices = @transform_7, window_bounds = array<i64: 32, 64>}, {pipeline_mode = #tpu.pipeline_mode<synchronous>, transform_indices = @transform_8, window_bounds = array<i64: 1, 64>}, {transform_indices = @transform_9, window_bounds = array<i64: 1, 8, 64>}]} {
    %c0 = arith.constant 0 : index
    %c0_0 = arith.constant 0 : index
    %c0_1 = arith.constant 0 : index
    %0 = vector.load %arg1[%c0, %c0_0, %c0_1] : memref<1x8x32xf32, #tpu.memory_space<vmem>>, vector<1x8x32xf32>
    %1 = vector.shape_cast %0 : vector<1x8x32xf32> to vector<8x32xf32>
    %c0_2 = arith.constant 0 : index
    %c0_3 = arith.constant 0 : index
    %c0_4 = arith.constant 0 : index
    %2 = vector.load %arg2[%c0_2, %c0_3, %c0_4] : memref<1x8x32xf32, #tpu.memory_space<vmem>>, vector<1x8x32xf32>
    %3 = vector.shape_cast %2 : vector<1x8x32xf32> to vector<8x32xf32>
    %c0_5 = arith.constant 0 : index
    %c0_6 = arith.constant 0 : index
    %c0_7 = arith.constant 0 : index
    %4 = vector.load %arg3[%c0_5, %c0_6, %c0_7] : memref<1x8x32xf32, #tpu.memory_space<vmem>>, vector<1x8x32xf32>
    %5 = vector.shape_cast %4 : vector<1x8x32xf32> to vector<8x32xf32>
    %c0_8 = arith.constant 0 : index
    %c0_9 = arith.constant 0 : index
    %6 = vector.load %arg4[%c0_8, %c0_9] : memref<32x64xf32, #tpu.memory_space<vmem>>, vector<32x64xf32>
    %c0_10 = arith.constant 0 : index
    %c0_11 = arith.constant 0 : index
    %7 = vector.load %arg6[%c0_10, %c0_11] : memref<32x64xf32, #tpu.memory_space<vmem>>, vector<32x64xf32>
    %c0_12 = arith.constant 0 : index
    %c0_13 = arith.constant 0 : index
    %8 = vector.load %arg8[%c0_12, %c0_13] : memref<32x64xf32, #tpu.memory_space<vmem>>, vector<32x64xf32>
    %cst = arith.constant dense<0.000000e+00> : vector<8x64xf32>
    %9 = tpu.matmul %1, %6, %cst {dimension_numbers = #tpu.dot_dimension_numbers<[1], [0], [0], [1], [0, 0, 1, 1], [], []>} : vector<8x32xf32>, vector<32x64xf32>, vector<8x64xf32> -> vector<8x64xf32>
    %c0_14 = arith.constant 0 : index
    %c0_15 = arith.constant 0 : index
    %10 = vector.load %arg5[%c0_14, %c0_15] : memref<1x64xf32, #tpu.memory_space<vmem>>, vector<1x64xf32>
    %11 = vector.broadcast %10 : vector<1x64xf32> to vector<8x64xf32>
    %12 = arith.addf %9, %11 : vector<8x64xf32>
    %cst_16 = arith.constant dense<0.000000e+00> : vector<8x64xf32>
    %13 = tpu.matmul %3, %7, %cst_16 {dimension_numbers = #tpu.dot_dimension_numbers<[1], [0], [0], [1], [0, 0, 1, 1], [], []>} : vector<8x32xf32>, vector<32x64xf32>, vector<8x64xf32> -> vector<8x64xf32>
    %c0_17 = arith.constant 0 : index
    %c0_18 = arith.constant 0 : index
    %14 = vector.load %arg7[%c0_17, %c0_18] : memref<1x64xf32, #tpu.memory_space<vmem>>, vector<1x64xf32>
    %15 = vector.broadcast %14 : vector<1x64xf32> to vector<8x64xf32>
    %16 = arith.addf %13, %15 : vector<8x64xf32>
    %cst_19 = arith.constant dense<0.000000e+00> : vector<8x64xf32>
    %17 = tpu.matmul %5, %8, %cst_19 {dimension_numbers = #tpu.dot_dimension_numbers<[1], [0], [0], [1], [0, 0, 1, 1], [], []>} : vector<8x32xf32>, vector<32x64xf32>, vector<8x64xf32> -> vector<8x64xf32>
    %c0_20 = arith.constant 0 : index
    %c0_21 = arith.constant 0 : index
    %18 = vector.load %arg9[%c0_20, %c0_21] : memref<1x64xf32, #tpu.memory_space<vmem>>, vector<1x64xf32>
    %19 = vector.broadcast %18 : vector<1x64xf32> to vector<8x64xf32>
    %20 = arith.addf %17, %19 : vector<8x64xf32>
    %cst_22 = arith.constant 2.500000e-01 : f32
    %21 = vector.broadcast %cst_22 : f32 to vector<8x64xf32>
    %22 = arith.mulf %12, %21 : vector<8x64xf32>
    %23 = vector.extract_strided_slice %22 {offsets = [0, 0], sizes = [8, 16], strides = [1, 1]} : vector<8x64xf32> to vector<8x16xf32>
    %24 = vector.extract_strided_slice %16 {offsets = [0, 0], sizes = [8, 16], strides = [1, 1]} : vector<8x64xf32> to vector<8x16xf32>
    %25 = vector.extract_strided_slice %20 {offsets = [0, 0], sizes = [8, 16], strides = [1, 1]} : vector<8x64xf32> to vector<8x16xf32>
    %cst_23 = arith.constant dense<0.000000e+00> : vector<8x8xf32>
    %26 = tpu.matmul %23, %24, %cst_23 {dimension_numbers = #tpu.dot_dimension_numbers<[1], [1], [0], [0], [0, 0, 1, 0], [], []>} : vector<8x16xf32>, vector<8x16xf32>, vector<8x8xf32> -> vector<8x8xf32>
    %cst_24 = arith.constant dense<0xFF800000> : vector<8xf32>
    %27 = vector.multi_reduction <maximumf>, %26, %cst_24 [1] : vector<8x8xf32> to vector<8xf32>
    %28 = vector.shape_cast %27 : vector<8xf32> to vector<8x1xf32>
    %29 = vector.broadcast %28 : vector<8x1xf32> to vector<8x8xf32>
    %30 = arith.subf %26, %29 : vector<8x8xf32>
    %31 = math.exp %30 : vector<8x8xf32>
    %cst_25 = arith.constant dense<0.000000e+00> : vector<8xf32>
    %32 = vector.multi_reduction <add>, %31, %cst_25 [1] : vector<8x8xf32> to vector<8xf32>
    %33 = vector.shape_cast %32 : vector<8xf32> to vector<8x1xf32>
    %34 = tpu.reciprocal %33 {approx = true} : vector<8x1xf32> -> vector<8x1xf32>
    %35 = vector.broadcast %34 : vector<8x1xf32> to vector<8x8xf32>
    %36 = arith.mulf %31, %35 : vector<8x8xf32>
    %cst_26 = arith.constant dense<0.000000e+00> : vector<8x16xf32>
    %37 = tpu.matmul %36, %25, %cst_26 {dimension_numbers = #tpu.dot_dimension_numbers<[1], [0], [0], [1], [0, 0, 1, 1], [], []>} : vector<8x8xf32>, vector<8x16xf32>, vector<8x16xf32> -> vector<8x16xf32>
    %38 = vector.extract_strided_slice %22 {offsets = [0, 16], sizes = [8, 16], strides = [1, 1]} : vector<8x64xf32> to vector<8x16xf32>
    %39 = vector.extract_strided_slice %16 {offsets = [0, 16], sizes = [8, 16], strides = [1, 1]} : vector<8x64xf32> to vector<8x16xf32>
    %40 = vector.extract_strided_slice %20 {offsets = [0, 16], sizes = [8, 16], strides = [1, 1]} : vector<8x64xf32> to vector<8x16xf32>
    %cst_27 = arith.constant dense<0.000000e+00> : vector<8x8xf32>
    %41 = tpu.matmul %38, %39, %cst_27 {dimension_numbers = #tpu.dot_dimension_numbers<[1], [1], [0], [0], [0, 0, 1, 0], [], []>} : vector<8x16xf32>, vector<8x16xf32>, vector<8x8xf32> -> vector<8x8xf32>
    %cst_28 = arith.constant dense<0xFF800000> : vector<8xf32>
    %42 = vector.multi_reduction <maximumf>, %41, %cst_28 [1] : vector<8x8xf32> to vector<8xf32>
    %43 = vector.shape_cast %42 : vector<8xf32> to vector<8x1xf32>
    %44 = vector.broadcast %43 : vector<8x1xf32> to vector<8x8xf32>
    %45 = arith.subf %41, %44 : vector<8x8xf32>
    %46 = math.exp %45 : vector<8x8xf32>
    %cst_29 = arith.constant dense<0.000000e+00> : vector<8xf32>
    %47 = vector.multi_reduction <add>, %46, %cst_29 [1] : vector<8x8xf32> to vector<8xf32>
    %48 = vector.shape_cast %47 : vector<8xf32> to vector<8x1xf32>
    %49 = tpu.reciprocal %48 {approx = true} : vector<8x1xf32> -> vector<8x1xf32>
    %50 = vector.broadcast %49 : vector<8x1xf32> to vector<8x8xf32>
    %51 = arith.mulf %46, %50 : vector<8x8xf32>
    %cst_30 = arith.constant dense<0.000000e+00> : vector<8x16xf32>
    %52 = tpu.matmul %51, %40, %cst_30 {dimension_numbers = #tpu.dot_dimension_numbers<[1], [0], [0], [1], [0, 0, 1, 1], [], []>} : vector<8x8xf32>, vector<8x16xf32>, vector<8x16xf32> -> vector<8x16xf32>
    %53 = vector.extract_strided_slice %22 {offsets = [0, 32], sizes = [8, 16], strides = [1, 1]} : vector<8x64xf32> to vector<8x16xf32>
    %54 = vector.extract_strided_slice %16 {offsets = [0, 32], sizes = [8, 16], strides = [1, 1]} : vector<8x64xf32> to vector<8x16xf32>
    %55 = vector.extract_strided_slice %20 {offsets = [0, 32], sizes = [8, 16], strides = [1, 1]} : vector<8x64xf32> to vector<8x16xf32>
    %cst_31 = arith.constant dense<0.000000e+00> : vector<8x8xf32>
    %56 = tpu.matmul %53, %54, %cst_31 {dimension_numbers = #tpu.dot_dimension_numbers<[1], [1], [0], [0], [0, 0, 1, 0], [], []>} : vector<8x16xf32>, vector<8x16xf32>, vector<8x8xf32> -> vector<8x8xf32>
    %cst_32 = arith.constant dense<0xFF800000> : vector<8xf32>
    %57 = vector.multi_reduction <maximumf>, %56, %cst_32 [1] : vector<8x8xf32> to vector<8xf32>
    %58 = vector.shape_cast %57 : vector<8xf32> to vector<8x1xf32>
    %59 = vector.broadcast %58 : vector<8x1xf32> to vector<8x8xf32>
    %60 = arith.subf %56, %59 : vector<8x8xf32>
    %61 = math.exp %60 : vector<8x8xf32>
    %cst_33 = arith.constant dense<0.000000e+00> : vector<8xf32>
    %62 = vector.multi_reduction <add>, %61, %cst_33 [1] : vector<8x8xf32> to vector<8xf32>
    %63 = vector.shape_cast %62 : vector<8xf32> to vector<8x1xf32>
    %64 = tpu.reciprocal %63 {approx = true} : vector<8x1xf32> -> vector<8x1xf32>
    %65 = vector.broadcast %64 : vector<8x1xf32> to vector<8x8xf32>
    %66 = arith.mulf %61, %65 : vector<8x8xf32>
    %cst_34 = arith.constant dense<0.000000e+00> : vector<8x16xf32>
    %67 = tpu.matmul %66, %55, %cst_34 {dimension_numbers = #tpu.dot_dimension_numbers<[1], [0], [0], [1], [0, 0, 1, 1], [], []>} : vector<8x8xf32>, vector<8x16xf32>, vector<8x16xf32> -> vector<8x16xf32>
    %68 = vector.extract_strided_slice %22 {offsets = [0, 48], sizes = [8, 16], strides = [1, 1]} : vector<8x64xf32> to vector<8x16xf32>
    %69 = vector.extract_strided_slice %16 {offsets = [0, 48], sizes = [8, 16], strides = [1, 1]} : vector<8x64xf32> to vector<8x16xf32>
    %70 = vector.extract_strided_slice %20 {offsets = [0, 48], sizes = [8, 16], strides = [1, 1]} : vector<8x64xf32> to vector<8x16xf32>
    %cst_35 = arith.constant dense<0.000000e+00> : vector<8x8xf32>
    %71 = tpu.matmul %68, %69, %cst_35 {dimension_numbers = #tpu.dot_dimension_numbers<[1], [1], [0], [0], [0, 0, 1, 0], [], []>} : vector<8x16xf32>, vector<8x16xf32>, vector<8x8xf32> -> vector<8x8xf32>
    %cst_36 = arith.constant dense<0xFF800000> : vector<8xf32>
    %72 = vector.multi_reduction <maximumf>, %71, %cst_36 [1] : vector<8x8xf32> to vector<8xf32>
    %73 = vector.shape_cast %72 : vector<8xf32> to vector<8x1xf32>
    %74 = vector.broadcast %73 : vector<8x1xf32> to vector<8x8xf32>
    %75 = arith.subf %71, %74 : vector<8x8xf32>
    %76 = math.exp %75 : vector<8x8xf32>
    %cst_37 = arith.constant dense<0.000000e+00> : vector<8xf32>
    %77 = vector.multi_reduction <add>, %76, %cst_37 [1] : vector<8x8xf32> to vector<8xf32>
    %78 = vector.shape_cast %77 : vector<8xf32> to vector<8x1xf32>
    %79 = tpu.reciprocal %78 {approx = true} : vector<8x1xf32> -> vector<8x1xf32>
    %80 = vector.broadcast %79 : vector<8x1xf32> to vector<8x8xf32>
    %81 = arith.mulf %76, %80 : vector<8x8xf32>
    %cst_38 = arith.constant dense<0.000000e+00> : vector<8x16xf32>
    %82 = tpu.matmul %81, %70, %cst_38 {dimension_numbers = #tpu.dot_dimension_numbers<[1], [0], [0], [1], [0, 0, 1, 1], [], []>} : vector<8x8xf32>, vector<8x16xf32>, vector<8x16xf32> -> vector<8x16xf32>
    %83 = tpu.concatenate %37, %52, %67, %82 in 1 : vector<8x16xf32>, vector<8x16xf32>, vector<8x16xf32>, vector<8x16xf32> -> vector<8x64xf32>
    %c0_39 = arith.constant 0 : index
    %c0_40 = arith.constant 0 : index
    %c0_41 = arith.constant 0 : index
    %84 = vector.load %arg10[%c0_39, %c0_40, %c0_41] : memref<1x8x64xf32, #tpu.memory_space<vmem>>, vector<1x8x64xf32>
    %85 = vector.shape_cast %84 : vector<1x8x64xf32> to vector<8x64xf32>
    %86 = vector.shape_cast %83 : vector<8x64xf32> to vector<1x8x64xf32>
    tpu.vector_store %arg10[%c0_39, %c0_40, %c0_41], %86 {strides = array<i32>} : memref<1x8x64xf32, #tpu.memory_space<vmem>>, vector<1x8x64xf32>,
    return
  }
  func.func @transform_0(%arg0: i32) -> (i32, i32, i32) {
    %c0_i32 = arith.constant 0 : i32
    %c0_i32_0 = arith.constant 0 : i32
    %c0_i32_1 = arith.constant 0 : i32
    return %arg0, %c0_i32, %c0_i32_0 : i32, i32, i32
  }
  func.func @transform_1(%arg0: i32) -> (i32, i32, i32) {
    %c0_i32 = arith.constant 0 : i32
    %c0_i32_0 = arith.constant 0 : i32
    %c0_i32_1 = arith.constant 0 : i32
    return %arg0, %c0_i32, %c0_i32_0 : i32, i32, i32
  }
  func.func @transform_2(%arg0: i32) -> (i32, i32, i32) {
    %c0_i32 = arith.constant 0 : i32
    %c0_i32_0 = arith.constant 0 : i32
    %c0_i32_1 = arith.constant 0 : i32
    return %arg0, %c0_i32, %c0_i32_0 : i32, i32, i32
  }
  func.func @transform_3(%arg0: i32) -> (i32, i32) {
    %c0_i32 = arith.constant 0 : i32
    %c0_i32_0 = arith.constant 0 : i32
    %c0_i32_1 = arith.constant 0 : i32
    return %c0_i32, %c0_i32_0 : i32, i32
  }
  func.func @transform_4(%arg0: i32) -> (i32, i32) {
    %c0_i32 = arith.constant 0 : i32
    %c0_i32_0 = arith.constant 0 : i32
    %c0_i32_1 = arith.constant 0 : i32
    return %c0_i32, %c0_i32_0 : i32, i32
  }
  func.func @transform_5(%arg0: i32) -> (i32, i32) {
    %c0_i32 = arith.constant 0 : i32
    %c0_i32_0 = arith.constant 0 : i32
    %c0_i32_1 = arith.constant 0 : i32
    return %c0_i32, %c0_i32_0 : i32, i32
  }
  func.func @transform_6(%arg0: i32) -> (i32, i32) {
    %c0_i32 = arith.constant 0 : i32
    %c0_i32_0 = arith.constant 0 : i32
    %c0_i32_1 = arith.constant 0 : i32
    return %c0_i32, %c0_i32_0 : i32, i32
  }
  func.func @transform_7(%arg0: i32) -> (i32, i32) {
    %c0_i32 = arith.constant 0 : i32
    %c0_i32_0 = arith.constant 0 : i32
    %c0_i32_1 = arith.constant 0 : i32
    return %c0_i32, %c0_i32_0 : i32, i32
  }
  func.func @transform_8(%arg0: i32) -> (i32, i32) {
    %c0_i32 = arith.constant 0 : i32
    %c0_i32_0 = arith.constant 0 : i32
    %c0_i32_1 = arith.constant 0 : i32
    return %c0_i32, %c0_i32_0 : i32, i32
  }
  func.func @transform_9(%arg0: i32) -> (i32, i32, i32) {
    %c0_i32 = arith.constant 0 : i32
    %c0_i32_0 = arith.constant 0 : i32
    %c0_i32_1 = arith.constant 0 : i32
    return %arg0, %c0_i32, %c0_i32_0 : i32, i32, i32
  }
}

</mosaic_0001>

<llo_original>
// kernel: tpu_custom_call.1
$region0: #{tpu_custom_call.1}
  #allocation0 [shape = 'u32[]', space=smem, size = 0x4, offset = 0x4, fixed_abs, tag = 'smem constant byte address 0x4 - core index']
  #allocation1 [shape = 'u32[144,128]{1,0:T(1,128)}', space=vmem, size = 0x12000, scoped, tag = 'internal scratch']
  %s0 = inlined_call_operand.hbm [shape: f32[2,8,32], index: 0, kind: input, shape index: {}]
  %s1 = inlined_call_operand.hbm [shape: f32[2,8,32], index: 1, kind: input, shape index: {}]
  %s2 = inlined_call_operand.hbm [shape: f32[2,8,32], index: 2, kind: input, shape index: {}]
  %s3 = inlined_call_operand.hbm [shape: f32[32,64], index: 3, kind: input, shape index: {}]
  %s4 = inlined_call_operand.vmem [shape: f32[1,64], index: 4, kind: input, shape index: {}]
  %s5 = inlined_call_operand.hbm [shape: f32[32,64], index: 5, kind: input, shape index: {}]
  %s6 = inlined_call_operand.vmem [shape: f32[1,64], index: 6, kind: input, shape index: {}]
  %s7 = inlined_call_operand.hbm [shape: f32[32,64], index: 7, kind: input, shape index: {}]
  %s8 = inlined_call_operand.vmem [shape: f32[1,64], index: 8, kind: input, shape index: {}]
  %s9 = inlined_call_operand.hbm [shape: f32[2,8,64], index: 9, kind: output, shape index: {}]
  %s10 = sld [smem:[#allocation0]]
  $region93: #{tpu_custom_call.1} parent=0
    _
  %s12 = ssub.s32 1, %s10
  %s13 = scalar_select 0, %s12, %s10
  $region1: #{tpu_custom_call.1} parent=0
    #allocation2 [shape = 'u8[8192]{0}', space=vmem, size = 0x2000, scoped, tag = 'input window, operand 0']
    #allocation3 [shape = 's32[2]{0}', space=sflag, size = 0x8, scoped, tag = 'scoped memory for tpu_custom_call.1']
    #allocation4 [shape = 's32[2]{0}', space=sflag, size = 0x8, scoped, tag = 'scoped memory for tpu_custom_call.1']
    #allocation5 [shape = 'u8[8192]{0}', space=vmem, size = 0x2000, scoped, tag = 'input window, operand 1']
    #allocation6 [shape = 's32[2]{0}', space=sflag, size = 0x8, scoped, tag = 'scoped memory for tpu_custom_call.1']
    #allocation7 [shape = 'u8[8192]{0}', space=vmem, size = 0x2000, scoped, tag = 'input window, operand 2']
    #allocation8 [shape = 'u8[16384]{0}', space=vmem, size = 0x4000, scoped, tag = 'input window, operand 3, single buffered']
    #allocation9 [shape = 's32[1]{0}', space=sflag, size = 0x4, scoped, tag = 'scoped memory for tpu_custom_call.1']
    #allocation10 [shape = 'u8[16384]{0}', space=vmem, size = 0x4000, scoped, tag = 'input window, operand 5, single buffered']
    #allocation11 [shape = 'u8[16384]{0}', space=vmem, size = 0x4000, scoped, tag = 'input window, operand 7, single buffered']
    #allocation12 [shape = 's32[1]{0}', space=sflag, size = 0x4, scoped, tag = 'scoped memory for tpu_custom_call.1']
    #allocation13 [shape = 'u8[8192]{0}', space=vmem, size = 0x2000, scoped, tag = 'output window, operand 0']
    %14 = vsyncpa [#allocation3], 0
    %s15 = scalar_lea.sflag [#allocation3], 1
    %16 = vsyncpa %s15, 0
    %17 = vsyncpa [#allocation6], 0
    %s18 = scalar_lea.sflag [#allocation6], 1
    %19 = vsyncpa %s18, 0
    %20 = vsyncpa [#allocation9], 0
    %21 = vsyncpa [#allocation12], 0
    %22 = vsyncpa [#allocation4], 0
    %s23 = scalar_lea.sflag [#allocation4], 1
    %24 = vsyncpa %s23, 0
    loop: start=0, step=1, limit=4
    $region2: #{tpu_custom_call.1} parent=1 // loop_pre_header
      _
    $region3: #{tpu_custom_call.1} parent=1 // loop_header
      %s26 = sphi 0, %s30
      %p27 = scmp.ge.s32.totalorder %s26, 4
      %s36 = sphi 0, %s38
      %s39 = sphi 0, %s36
      %s40 = sphi 0, %s39
      %s56 = sphi 0, %s40
      %s62 = sphi 0, %s64
      %s65 = sphi 0, %s62
      %s66 = sphi 0, %s65
      %s82 = sphi 0, %s66
      %s88 = sphi 0, %s90
      %s91 = sphi 0, %s88
      %s92 = sphi 0, %s91
      %s108 = sphi 0, %s92
      %s112 = sphi 0, %s112
      %s114 = sphi 0, %s112
      %s115 = sphi 0, %s114
      %s129 = sphi 0, %s115
      %s133 = sphi 0, %s133
      %s135 = sphi 0, %s133
      %s136 = sphi 0, %s135
      %s150 = sphi 0, %s136
      %s154 = sphi 0, %s154
      %s156 = sphi 0, %s154
      %s157 = sphi 0, %s156
      %s171 = sphi 0, %s157
      %s175 = sphi 0, %s175
      %s177 = sphi 0, %s175
      %s178 = sphi 0, %s177
      %s192 = sphi 0, %s178
      %s196 = sphi 0, %s196
      %s198 = sphi 0, %s196
      %s199 = sphi 0, %s198
      %s213 = sphi 0, %s199
      %s217 = sphi 0, %s217
      %s219 = sphi 0, %s217
      %s220 = sphi 0, %s219
      %s234 = sphi 0, %s220
      %s240 = sphi 0, %s242
      %s243 = sphi 0, %s240
      %s244 = sphi 0, %s243
      %s260 = sphi 0, %s244
    $region4: #{tpu_custom_call.1} parent=1 // loop_header_branch
      %29 = sbr.rel (%p27) target = $region8
    $region5: #{tpu_custom_call.1} parent=1 // loop_body
      %s31 = ssub.s32 %s26, 1
      %s32 = ssub.s32 %s26, 2
      %s33 = sadd.s32 %s26, 1
      %s34 = ssub.s32 %s26, %s33
      %p35 = scmp.eq.s32.totalorder %s34, 0
      %s37 = sadd.s32 %s36, 1
      %s38 = scalar_select %p35, %s36, %s37
      %p41 = pneg %p35
      %p42 = scmp.eq.s32.totalorder %s26, 1
      %p43 = por %p41, %p42
      %p44 = scmp.ne.s32.totalorder %s36, %s39
      %p45 = scmp.eq.s32.totalorder %s26, 0
      %p46 = por %p44, %p45
      %p47 = scmp.ne.s32.totalorder %s36, %s39
      %p48 = scmp.eq.s32.totalorder %s31, 1
      %p49 = por %p47, %p48
      %p50 = scmp.ne.s32.totalorder %s39, %s40
      %p51 = scmp.eq.s32.totalorder %s31, 0
      %p52 = por %p50, %p51
      %p53 = scmp.ne.s32.totalorder %s39, %s40
      %p54 = scmp.eq.s32.totalorder %s32, 1
      %p55 = por %p53, %p54
      %p57 = scmp.ne.s32.totalorder %s40, %s56
      %p58 = scmp.eq.s32.totalorder %s32, 0
      %p59 = por %p57, %p58
      %s60 = ssub.s32 %s26, %s33
      %p61 = scmp.eq.s32.totalorder %s60, 0
      %s63 = sadd.s32 %s62, 1
      %s64 = scalar_select %p61, %s62, %s63
      %p67 = pneg %p61
      %p68 = scmp.eq.s32.totalorder %s26, 1
      %p69 = por %p67, %p68
      %p70 = scmp.ne.s32.totalorder %s62, %s65
      %p71 = scmp.eq.s32.totalorder %s26, 0
      %p72 = por %p70, %p71
      %p73 = scmp.ne.s32.totalorder %s62, %s65
      %p74 = scmp.eq.s32.totalorder %s31, 1
      %p75 = por %p73, %p74
      %p76 = scmp.ne.s32.totalorder %s65, %s66
      %p77 = scmp.eq.s32.totalorder %s31, 0
      %p78 = por %p76, %p77
      %p79 = scmp.ne.s32.totalorder %s65, %s66
      %p80 = scmp.eq.s32.totalorder %s32, 1
      %p81 = por %p79, %p80
      %p83 = scmp.ne.s32.totalorder %s66, %s82
      %p84 = scmp.eq.s32.totalorder %s32, 0
      %p85 = por %p83, %p84
      %s86 = ssub.s32 %s26, %s33
      %p87 = scmp.eq.s32.totalorder %s86, 0
      %s89 = sadd.s32 %s88, 1
      %s90 = scalar_select %p87, %s88, %s89
      %p93 = pneg %p87
      %p94 = scmp.eq.s32.totalorder %s26, 1
      %p95 = por %p93, %p94
      %p96 = scmp.ne.s32.totalorder %s88, %s91
      %p97 = scmp.eq.s32.totalorder %s26, 0
      %p98 = por %p96, %p97
      %p99 = scmp.ne.s32.totalorder %s88, %s91
      %p100 = scmp.eq.s32.totalorder %s31, 1
      %p101 = por %p99, %p100
      %p102 = scmp.ne.s32.totalorder %s91, %s92
      %p103 = scmp.eq.s32.totalorder %s31, 0
      %p104 = por %p102, %p103
      %p105 = scmp.ne.s32.totalorder %s91, %s92
      %p106 = scmp.eq.s32.totalorder %s32, 1
      %p107 = por %p105, %p106
      %p109 = scmp.ne.s32.totalorder %s92, %s108
      %p110 = scmp.eq.s32.totalorder %s32, 0
      %p111 = por %p109, %p110
      %s113 = sadd.s32 %s112, 1
      %p116 = scmp.eq.s32.totalorder %s26, 1
      %p117 = scmp.ne.s32.totalorder %s112, %s114
      %p118 = scmp.eq.s32.totalorder %s26, 0
      %p119 = por %p117, %p118
      %p120 = scmp.ne.s32.totalorder %s112, %s114
      %p121 = scmp.eq.s32.totalorder %s31, 1
      %p122 = por %p120, %p121
      %p123 = scmp.ne.s32.totalorder %s114, %s115
      %p124 = scmp.eq.s32.totalorder %s31, 0
      %p125 = por %p123, %p124
      %p126 = scmp.ne.s32.totalorder %s114, %s115
      %p127 = scmp.eq.s32.totalorder %s32, 1
      %p128 = por %p126, %p127
      %p130 = scmp.ne.s32.totalorder %s115, %s129
      %p131 = scmp.eq.s32.totalorder %s32, 0
      %p132 = por %p130, %p131
      %s134 = sadd.s32 %s133, 1
      %p137 = scmp.eq.s32.totalorder %s26, 1
      %p138 = scmp.ne.s32.totalorder %s133, %s135
      %p139 = scmp.eq.s32.totalorder %s26, 0
      %p140 = por %p138, %p139
      %p141 = scmp.ne.s32.totalorder %s133, %s135
      %p142 = scmp.eq.s32.totalorder %s31, 1
      %p143 = por %p141, %p142
      %p144 = scmp.ne.s32.totalorder %s135, %s136
      %p145 = scmp.eq.s32.totalorder %s31, 0
      %p146 = por %p144, %p145
      %p147 = scmp.ne.s32.totalorder %s135, %s136
      %p148 = scmp.eq.s32.totalorder %s32, 1
      %p149 = por %p147, %p148
      %p151 = scmp.ne.s32.totalorder %s136, %s150
      %p152 = scmp.eq.s32.totalorder %s32, 0
      %p153 = por %p151, %p152
      %s155 = sadd.s32 %s154, 1
      %p158 = scmp.eq.s32.totalorder %s26, 1
      %p159 = scmp.ne.s32.totalorder %s154, %s156
      %p160 = scmp.eq.s32.totalorder %s26, 0
      %p161 = por %p159, %p160
      %p162 = scmp.ne.s32.totalorder %s154, %s156
      %p163 = scmp.eq.s32.totalorder %s31, 1
      %p164 = por %p162, %p163
      %p165 = scmp.ne.s32.totalorder %s156, %s157
      %p166 = scmp.eq.s32.totalorder %s31, 0
      %p167 = por %p165, %p166
      %p168 = scmp.ne.s32.totalorder %s156, %s157
      %p169 = scmp.eq.s32.totalorder %s32, 1
      %p170 = por %p168, %p169
      %p172 = scmp.ne.s32.totalorder %s157, %s171
      %p173 = scmp.eq.s32.totalorder %s32, 0
      %p174 = por %p172, %p173
      %s176 = sadd.s32 %s175, 1
      %p179 = scmp.eq.s32.totalorder %s26, 1
      %p180 = scmp.ne.s32.totalorder %s175, %s177
      %p181 = scmp.eq.s32.totalorder %s26, 0
      %p182 = por %p180, %p181
      %p183 = scmp.ne.s32.totalorder %s175, %s177
      %p184 = scmp.eq.s32.totalorder %s31, 1
      %p185 = por %p183, %p184
      %p186 = scmp.ne.s32.totalorder %s177, %s178
      %p187 = scmp.eq.s32.totalorder %s31, 0
      %p188 = por %p186, %p187
      %p189 = scmp.ne.s32.totalorder %s177, %s178
      %p190 = scmp.eq.s32.totalorder %s32, 1
      %p191 = por %p189, %p190
      %p193 = scmp.ne.s32.totalorder %s178, %s192
      %p194 = scmp.eq.s32.totalorder %s32, 0
      %p195 = por %p193, %p194
      %s197 = sadd.s32 %s196, 1
      %p200 = scmp.eq.s32.totalorder %s26, 1
      %p201 = scmp.ne.s32.totalorder %s196, %s198
      %p202 = scmp.eq.s32.totalorder %s26, 0
      %p203 = por %p201, %p202
      %p204 = scmp.ne.s32.totalorder %s196, %s198
      %p205 = scmp.eq.s32.totalorder %s31, 1
      %p206 = por %p204, %p205
      %p207 = scmp.ne.s32.totalorder %s198, %s199
      %p208 = scmp.eq.s32.totalorder %s31, 0
      %p209 = por %p207, %p208
      %p210 = scmp.ne.s32.totalorder %s198, %s199
      %p211 = scmp.eq.s32.totalorder %s32, 1
      %p212 = por %p210, %p211
      %p214 = scmp.ne.s32.totalorder %s199, %s213
      %p215 = scmp.eq.s32.totalorder %s32, 0
      %p216 = por %p214, %p215
      %s218 = sadd.s32 %s217, 1
      %p221 = scmp.eq.s32.totalorder %s26, 1
      %p222 = scmp.ne.s32.totalorder %s217, %s219
      %p223 = scmp.eq.s32.totalorder %s26, 0
      %p224 = por %p222, %p223
      %p225 = scmp.ne.s32.totalorder %s217, %s219
      %p226 = scmp.eq.s32.totalorder %s31, 1
      %p227 = por %p225, %p226
      %p228 = scmp.ne.s32.totalorder %s219, %s220
      %p229 = scmp.eq.s32.totalorder %s31, 0
      %p230 = por %p228, %p229
      %p231 = scmp.ne.s32.totalorder %s219, %s220
      %p232 = scmp.eq.s32.totalorder %s32, 1
      %p233 = por %p231, %p232
      %p235 = scmp.ne.s32.totalorder %s220, %s234
      %p236 = scmp.eq.s32.totalorder %s32, 0
      %p237 = por %p235, %p236
      %s238 = ssub.s32 %s26, %s33
      %p239 = scmp.eq.s32.totalorder %s238, 0
      %s241 = sadd.s32 %s240, 1
      %s242 = scalar_select %p239, %s240, %s241
      %p245 = pneg %p239
      %p246 = scmp.eq.s32.totalorder %s26, 1
      %p247 = por %p245, %p246
      %p248 = scmp.ne.s32.totalorder %s240, %s243
      %p249 = scmp.eq.s32.totalorder %s26, 0
      %p250 = por %p248, %p249
      %p251 = scmp.ne.s32.totalorder %s240, %s243
      %p252 = scmp.eq.s32.totalorder %s31, 1
      %p253 = por %p251, %p252
      %p254 = scmp.ne.s32.totalorder %s243, %s244
      %p255 = scmp.eq.s32.totalorder %s31, 0
      %p256 = por %p254, %p255
      %p257 = scmp.ne.s32.totalorder %s243, %s244
      %p258 = scmp.eq.s32.totalorder %s32, 1
      %p259 = por %p257, %p258
      %p261 = scmp.ne.s32.totalorder %s244, %s260
      %p262 = scmp.eq.s32.totalorder %s32, 0
      %p263 = por %p261, %p262
      %p264 = scmp.le.s32.totalorder 1, %s26
      %p265 = scmp.lt.s32.totalorder %s26, 3
      %p266 = pnand %p264, %p265
      %p267 = pneg %p266
      // Predicated region
      $region9: #{tpu_custom_call.1} parent=5 // pred_check
        _
      $region10: #{tpu_custom_call.1} parent=5 // pred_check_branch
        %269 = sbr.rel (%p266) target = $region12
      $region11: #{tpu_custom_call.1} parent=5 // pred_region
        %s270 = ssub.s32 %s26, 1
        // Predicated region
        $region13: #{tpu_custom_call.1} parent=11 // pred_check
          %p271 = pneg %p125
        $region14: #{tpu_custom_call.1} parent=11 // pred_check_branch
          %273 = sbr.rel (%p271) target = $region16
        $region15: #{tpu_custom_call.1} parent=11 // pred_region
          %s275 = ssub.s32 512, 512
          %276 = vsyncadd [#allocation9], %s275
          %s277 = sshll.u32 [#allocation8], 4
          %s278 = int_to_ptr.vmem [resolvable:$true] %s277
          %283 = dma.hbm_to_vmem [thread:$0]  %s3, 512, %s278, [#allocation9], 128, 128, 8
        $region16: #{tpu_custom_call.1} parent=11 // pred_fallthru
          _
        // Predicated region
        $region17: #{tpu_custom_call.1} parent=11 // pred_check
          %p284 = pneg %p146
        $region18: #{tpu_custom_call.1} parent=11 // pred_check_branch
          %286 = sbr.rel (%p284) target = $region20
        $region19: #{tpu_custom_call.1} parent=11 // pred_region
          _
        $region20: #{tpu_custom_call.1} parent=11 // pred_fallthru
          _
        // Predicated region
        $region21: #{tpu_custom_call.1} parent=11 // pred_check
          %p287 = pneg %p167
        $region22: #{tpu_custom_call.1} parent=11 // pred_check_branch
          %289 = sbr.rel (%p287) target = $region24
        $region23: #{tpu_custom_call.1} parent=11 // pred_region
          %s291 = ssub.s32 512, 512
          %292 = vsyncadd [#allocation9], %s291
          %s293 = sshll.u32 [#allocation10], 4
          %s294 = int_to_ptr.vmem [resolvable:$true] %s293
          %299 = dma.hbm_to_vmem [thread:$0]  %s5, 512, %s294, [#allocation9], 128, 128, 8
        $region24: #{tpu_custom_call.1} parent=11 // pred_fallthru
          _
        // Predicated region
        $region25: #{tpu_custom_call.1} parent=11 // pred_check
          %p300 = pneg %p188
        $region26: #{tpu_custom_call.1} parent=11 // pred_check_branch
          %302 = sbr.rel (%p300) target = $region28
        $region27: #{tpu_custom_call.1} parent=11 // pred_region
          _
        $region28: #{tpu_custom_call.1} parent=11 // pred_fallthru
          _
        // Predicated region
        $region29: #{tpu_custom_call.1} parent=11 // pred_check
          %p303 = pneg %p209
        $region30: #{tpu_custom_call.1} parent=11 // pred_check_branch
          %305 = sbr.rel (%p303) target = $region32
        $region31: #{tpu_custom_call.1} parent=11 // pred_region
          %s307 = ssub.s32 512, 512
          %308 = vsyncadd [#allocation12], %s307
          %s309 = sshll.u32 [#allocation11], 4
          %s310 = int_to_ptr.vmem [resolvable:$true] %s309
          %315 = dma.hbm_to_vmem [thread:$0]  %s7, 512, %s310, [#allocation12], 128, 128, 8
        $region32: #{tpu_custom_call.1} parent=11 // pred_fallthru
          _
        // Predicated region
        $region33: #{tpu_custom_call.1} parent=11 // pred_check
          %p316 = pneg %p230
        $region34: #{tpu_custom_call.1} parent=11 // pred_check_branch
          %318 = sbr.rel (%p316) target = $region36
        $region35: #{tpu_custom_call.1} parent=11 // pred_region
          _
        $region36: #{tpu_custom_call.1} parent=11 // pred_fallthru
          _
      $region12: #{tpu_custom_call.1} parent=5 // pred_fallthru
        _
      %p319 = scmp.lt.s32.totalorder %s26, 2
      // Predicated region
      $region37: #{tpu_custom_call.1} parent=5 // pred_check
        %p320 = pneg %p319
      $region38: #{tpu_custom_call.1} parent=5 // pred_check_branch
        %322 = sbr.rel (%p320) target = $region40
      $region39: #{tpu_custom_call.1} parent=5 // pred_region
        // Predicated region
        $region41: #{tpu_custom_call.1} parent=39 // pred_check
          %p323 = pneg %p46
        $region42: #{tpu_custom_call.1} parent=39 // pred_check_branch
          %325 = sbr.rel (%p323) target = $region44
        $region43: #{tpu_custom_call.1} parent=39 // pred_region
          %s326 = sand.u32 %s36, 1
          %s327 = scalar_lea.sflag [#allocation3], %s326
          %s328 = sand.u32 %s36, 1
          %s329 = smul.addr %s328, 8
          %s330 = scalar_lea.vmem [#allocation2], %s329
          %s332 = ssub.s32 128, 128
          %333 = vsyncadd %s327, %s332
          %s334 = smul.addr %s26, 128
          %s335 = scalar_lea.hbm %s0, %s334
          %s337 = sshll.u32 %s330, 4
          %s338 = int_to_ptr.vmem [resolvable:$true] %s337
          %340 = dma.hbm_to_vmem [thread:$0]  %s335, 128, %s338, %s327
        $region44: #{tpu_custom_call.1} parent=39 // pred_fallthru
          _
        // Predicated region
        $region45: #{tpu_custom_call.1} parent=39 // pred_check
          %p341 = pneg %p72
        $region46: #{tpu_custom_call.1} parent=39 // pred_check_branch
          %343 = sbr.rel (%p341) target = $region48
        $region47: #{tpu_custom_call.1} parent=39 // pred_region
          %s344 = sand.u32 %s26, 1
          %s345 = scalar_lea.sflag [#allocation6], %s344
          %s346 = sand.u32 %s62, 1
          %s347 = smul.addr %s346, 8
          %s348 = scalar_lea.vmem [#allocation5], %s347
          %s350 = ssub.s32 128, 128
          %351 = vsyncadd %s345, %s350
          %s352 = smul.addr %s26, 128
          %s353 = scalar_lea.hbm %s1, %s352
          %s355 = sshll.u32 %s348, 4
          %s356 = int_to_ptr.vmem [resolvable:$true] %s355
          %358 = dma.hbm_to_vmem [thread:$0]  %s353, 128, %s356, %s345
        $region48: #{tpu_custom_call.1} parent=39 // pred_fallthru
          _
        // Predicated region
        $region49: #{tpu_custom_call.1} parent=39 // pred_check
          %p359 = pneg %p98
        $region50: #{tpu_custom_call.1} parent=39 // pred_check_branch
          %361 = sbr.rel (%p359) target = $region52
        $region51: #{tpu_custom_call.1} parent=39 // pred_region
          %s362 = sand.u32 %s26, 1
          %s363 = scalar_lea.sflag [#allocation6], %s362
          %s364 = sand.u32 %s88, 1
          %s365 = smul.addr %s364, 8
          %s366 = scalar_lea.vmem [#allocation7], %s365
          %s368 = ssub.s32 128, 128
          %369 = vsyncadd %s363, %s368
          %s370 = smul.addr %s26, 128
          %s371 = scalar_lea.hbm %s2, %s370
          %s373 = sshll.u32 %s366, 4
          %s374 = int_to_ptr.vmem [resolvable:$true] %s373
          %376 = dma.hbm_to_vmem [thread:$0]  %s371, 128, %s374, %s363
        $region52: #{tpu_custom_call.1} parent=39 // pred_fallthru
          _
      $region40: #{tpu_custom_call.1} parent=5 // pred_fallthru
        _
      %p377 = scmp.le.s32.totalorder 1, %s26
      %p378 = scmp.lt.s32.totalorder %s26, 3
      %p379 = pnand %p377, %p378
      %p380 = pneg %p379
      // Predicated region
      $region53: #{tpu_custom_call.1} parent=5 // pred_check
        _
      $region54: #{tpu_custom_call.1} parent=5 // pred_check_branch
        %382 = sbr.rel (%p379) target = $region56
      $region55: #{tpu_custom_call.1} parent=5 // pred_region
        %s383 = ssub.s32 %s26, 1
        %s384 = sand.u32 %s39, 1
        %s385 = scalar_lea.sflag [#allocation3], %s384
        %s386 = sand.u32 %s39, 1
        %s387 = smul.addr %s386, 8
        %s388 = scalar_lea.vmem [#allocation2], %s387
        // Predicated region
        $region57: #{tpu_custom_call.1} parent=55 // pred_check
          %p389 = pneg %p52
        $region58: #{tpu_custom_call.1} parent=55 // pred_check_branch
          %391 = sbr.rel (%p389) target = $region60
        $region59: #{tpu_custom_call.1} parent=55 // pred_region
          %392 = dma.done %s385, 128
        $region60: #{tpu_custom_call.1} parent=55 // pred_fallthru
          _
        %s393 = sand.u32 %s31, 1
        %s394 = scalar_lea.sflag [#allocation6], %s393
        %s395 = sand.u32 %s65, 1
        %s396 = smul.addr %s395, 8
        %s397 = scalar_lea.vmem [#allocation5], %s396
        // Predicated region
        $region61: #{tpu_custom_call.1} parent=55 // pred_check
          %p398 = pneg %p78
        $region62: #{tpu_custom_call.1} parent=55 // pred_check_branch
          %400 = sbr.rel (%p398) target = $region64
        $region63: #{tpu_custom_call.1} parent=55 // pred_region
          %401 = dma.done %s394, 128
        $region64: #{tpu_custom_call.1} parent=55 // pred_fallthru
          _
        %s402 = sand.u32 %s31, 1
        %s403 = scalar_lea.sflag [#allocation6], %s402
        %s404 = sand.u32 %s91, 1
        %s405 = smul.addr %s404, 8
        %s406 = scalar_lea.vmem [#allocation7], %s405
        // Predicated region
        $region65: #{tpu_custom_call.1} parent=55 // pred_check
          %p407 = pneg %p104
        $region66: #{tpu_custom_call.1} parent=55 // pred_check_branch
          %409 = sbr.rel (%p407) target = $region68
        $region67: #{tpu_custom_call.1} parent=55 // pred_region
          %410 = dma.done %s403, 128
        $region68: #{tpu_custom_call.1} parent=55 // pred_fallthru
          _
        // Predicated region
        $region69: #{tpu_custom_call.1} parent=55 // pred_check
          %p411 = pneg %p125
        $region70: #{tpu_custom_call.1} parent=55 // pred_check_branch
          %413 = sbr.rel (%p411) target = $region72
        $region71: #{tpu_custom_call.1} parent=55 // pred_region
          %414 = dma.done [#allocation9], 512
        $region72: #{tpu_custom_call.1} parent=55 // pred_fallthru
          _
        // Predicated region
        $region73: #{tpu_custom_call.1} parent=55 // pred_check
          %p415 = pneg %p167
        $region74: #{tpu_custom_call.1} parent=55 // pred_check_branch
          %417 = sbr.rel (%p415) target = $region76
        $region75: #{tpu_custom_call.1} parent=55 // pred_region
          %418 = dma.done [#allocation9], 512
        $region76: #{tpu_custom_call.1} parent=55 // pred_fallthru
          _
        // Predicated region
        $region77: #{tpu_custom_call.1} parent=55 // pred_check
          %p419 = pneg %p209
        $region78: #{tpu_custom_call.1} parent=55 // pred_check_branch
          %421 = sbr.rel (%p419) target = $region80
        $region79: #{tpu_custom_call.1} parent=55 // pred_region
          %422 = dma.done [#allocation12], 512
        $region80: #{tpu_custom_call.1} parent=55 // pred_fallthru
          _
        %s423 = sand.u32 %s39, 1
        %s424 = scalar_lea.sflag [#allocation3], %s423
        %s425 = sand.u32 %s39, 1
        %s426 = smul.addr %s425, 8
        %s427 = scalar_lea.vmem [#allocation2], %s426
        %p428 = pneg %p52
        %p429 = pneg %p49
        %s430 = sand.u32 %s31, 1
        %s431 = scalar_lea.sflag [#allocation6], %s430
        %s432 = sand.u32 %s65, 1
        %s433 = smul.addr %s432, 8
        %s434 = scalar_lea.vmem [#allocation5], %s433
        %p435 = pneg %p78
        %p436 = pneg %p75
        %s437 = sand.u32 %s31, 1
        %s438 = scalar_lea.sflag [#allocation6], %s437
        %s439 = sand.u32 %s91, 1
        %s440 = smul.addr %s439, 8
        %s441 = scalar_lea.vmem [#allocation7], %s440
        %p442 = pneg %p104
        %p443 = pneg %p101
        %p444 = pneg %p125
        %p445 = pneg %p122
        %p446 = pneg %p146
        %p447 = pneg %p143
        %p448 = pneg %p167
        %p449 = pneg %p164
        %p450 = pneg %p188
        %p451 = pneg %p185
        %p452 = pneg %p209
        %p453 = pneg %p206
        %p454 = pneg %p230
        %p455 = pneg %p227
        %p456 = pneg %p256
        %p457 = pneg %p253
        %s458 = sand.u32 %s243, 1
        %s459 = scalar_lea.sflag [#allocation4], %s458
        %s460 = sand.u32 %s243, 1
        %s461 = smul.addr %s460, 8
        %s462 = scalar_lea.vmem [#allocation13], %s461
        %v463 = vld [vmem:[%s388] sm:$0xff]
        %v464 = vld [vmem:[%s397] sm:$0xff]
        %v465 = vld [vmem:[%s406] sm:$0xff]
        %v466 = vld [vmem:[#allocation8] sm:$0xff]
        %v467 = vld [vmem:[#allocation8 + $0x8] sm:$0xff]
        %v468 = vld [vmem:[#allocation8 + $0x10] sm:$0xff]
        %v469 = vld [vmem:[#allocation8 + $0x18] sm:$0xff]
        %v470 = vld [vmem:[#allocation10] sm:$0xff]
        %v471 = vld [vmem:[#allocation10 + $0x8] sm:$0xff]
        %v472 = vld [vmem:[#allocation10 + $0x10] sm:$0xff]
        %v473 = vld [vmem:[#allocation10 + $0x18] sm:$0xff]
        %v474 = vld [vmem:[#allocation11] sm:$0xff]
        %v475 = vld [vmem:[#allocation11 + $0x8] sm:$0xff]
        %v476 = vld [vmem:[#allocation11 + $0x10] sm:$0xff]
        %v477 = vld [vmem:[#allocation11 + $0x18] sm:$0xff]
        %v478 = vld [vmem:[%s4] sm:$0x1]
        %v480 = vlaneseq
        %v481 = vshrl.u32 %v480, 7
        %v482 = vsub.s32 0, %v481
        %v483 = vrot.slane %v478, %v482
        %vm485 = vcmask 261120
        %v487 = vsel %vm485, %v463, 0
        %489 = vmatprep.subr.mxu0 0.0
        %490 = vmatpush1.msra.mxu0 %v466
        %491 = vmatprep.subr.mxu0 0.0
        %492 = vmatpush1.msra.mxu0 %v467
        %493 = vmatprep.subr.mxu0 0.0
        %494 = vmatpush1.msra.mxu0 %v468
        %495 = vmatprep.subr.mxu0 0.0
        %496 = vmatpush1.msra.mxu0 %v469
        %497 = vmatprep.subr.mxu0 0.0
        %498 = vmatpush1.msra.mxu0 0.0
        %499 = vmatprep.subr.mxu0 0.0
        %500 = vmatpush1.msra.mxu0 0.0
        %501 = vmatprep.subr.mxu0 0.0
        %502 = vmatpush1.msra.mxu0 0.0
        %503 = vmatprep.subr.mxu0 0.0
        %504 = vmatpush1.msra.mxu0 0.0
        %505 = vmatprep.subr.mxu0 0.0
        %506 = vmatpush1.msra.mxu0 0.0
        %507 = vmatprep.subr.mxu0 0.0
        %508 = vmatpush1.msra.mxu0 0.0
        %509 = vmatprep.subr.mxu0 0.0
        %510 = vmatpush1.msra.mxu0 0.0
        %511 = vmatprep.subr.mxu0 0.0
        %512 = vmatpush1.msra.mxu0 0.0
        %513 = vmatprep.subr.mxu0 0.0
        %514 = vmatpush1.msra.mxu0 0.0
        %515 = vmatprep.subr.mxu0 0.0
        %516 = vmatpush1.msra.mxu0 0.0
        %517 = vmatprep.subr.mxu0 0.0
        %518 = vmatpush1.msra.mxu0 0.0
        %519 = vmatprep.subr.mxu0 0.0
        %520 = vmatpush1.msra.mxu0 0.0
        %521 = vmatprep.subr.mxu0 0.0
        %522 = vmatpush1.msra.mxu0 0.0
        %523 = vmatprep.subr.mxu0 0.0
        %524 = vmatpush1.msra.mxu0 0.0
        %525 = vmatprep.subr.mxu0 0.0
        %526 = vmatpush1.msra.mxu0 0.0
        %527 = vmatprep.subr.mxu0 0.0
        %528 = vmatpush1.msra.mxu0 0.0
        %529 = vmatprep.subr.mxu0 0.0
        %530 = vmatpush1.msra.mxu0 0.0
        %531 = vmatprep.subr.mxu0 0.0
        %532 = vmatpush1.msra.mxu0 0.0
        %533 = vmatprep.subr.mxu0 0.0
        %534 = vmatpush1.msra.mxu0 0.0
        %535 = vmatprep.subr.mxu0 0.0
        %536 = vmatpush1.msra.mxu0 0.0
        %537 = vmatprep.subr.mxu0 0.0
        %538 = vmatpush1.msra.mxu0 0.0
        %539 = vmatprep.subr.mxu0 0.0
        %540 = vmatpush1.msra.mxu0 0.0
        %541 = vmatprep.subr.mxu0 0.0
        %542 = vmatpush1.msra.mxu0 0.0
        %543 = vmatprep.subr.mxu0 0.0
        %544 = vmatpush1.msra.mxu0 0.0
        %545 = vmatprep.subr.mxu0 0.0
        %546 = vmatpush1.msra.mxu0 0.0
        %547 = vmatprep.subr.mxu0 0.0
        %548 = vmatpush1.msra.mxu0 0.0
        %549 = vmatprep.subr.mxu0 0.0
        %550 = vmatpush1.msra.mxu0 0.0
        %551 = vmatprep.subr.mxu0 0.0
        %552 = vmatpush1.msra.mxu0 0.0
        %553 = vmatprep.mubr.f32.mxu0 0.0
        %554 = vmatmul.mubr.f32.gmra.mrb[0].mxu0 %v487
        %v555 = vpop.f32.mrb[0].mxu0
        %v556 = vadd.f32 %v483, %v555
        %v557 = vpop.f32.mrb[0].mxu0
        %558 = vdwg.mxu0
        %v559 = vld [vmem:[%s6] sm:$0x1]
        %v561 = vlaneseq
        %v562 = vshrl.u32 %v561, 7
        %v563 = vsub.s32 0, %v562
        %v564 = vrot.slane %v559, %v563
        %v567 = vsel %vm485, %v464, 0
        %569 = vmatprep.subr.mxu0 0.0
        %570 = vmatpush1.msra.mxu0 %v470
        %571 = vmatprep.subr.mxu0 0.0
        %572 = vmatpush1.msra.mxu0 %v471
        %573 = vmatprep.subr.mxu0 0.0
        %574 = vmatpush1.msra.mxu0 %v472
        %575 = vmatprep.subr.mxu0 0.0
        %576 = vmatpush1.msra.mxu0 %v473
        %577 = vmatprep.subr.mxu0 0.0
        %578 = vmatpush1.msra.mxu0 0.0
        %579 = vmatprep.subr.mxu0 0.0
        %580 = vmatpush1.msra.mxu0 0.0
        %581 = vmatprep.subr.mxu0 0.0
        %582 = vmatpush1.msra.mxu0 0.0
        %583 = vmatprep.subr.mxu0 0.0
        %584 = vmatpush1.msra.mxu0 0.0
        %585 = vmatprep.subr.mxu0 0.0
        %586 = vmatpush1.msra.mxu0 0.0
        %587 = vmatprep.subr.mxu0 0.0
        %588 = vmatpush1.msra.mxu0 0.0
        %589 = vmatprep.subr.mxu0 0.0
        %590 = vmatpush1.msra.mxu0 0.0
        %591 = vmatprep.subr.mxu0 0.0
        %592 = vmatpush1.msra.mxu0 0.0
        %593 = vmatprep.subr.mxu0 0.0
        %594 = vmatpush1.msra.mxu0 0.0
        %595 = vmatprep.subr.mxu0 0.0
        %596 = vmatpush1.msra.mxu0 0.0
        %597 = vmatprep.subr.mxu0 0.0
        %598 = vmatpush1.msra.mxu0 0.0
        %599 = vmatprep.subr.mxu0 0.0
        %600 = vmatpush1.msra.mxu0 0.0
        %601 = vmatprep.subr.mxu0 0.0
        %602 = vmatpush1.msra.mxu0 0.0
        %603 = vmatprep.subr.mxu0 0.0
        %604 = vmatpush1.msra.mxu0 0.0
        %605 = vmatprep.subr.mxu0 0.0
        %606 = vmatpush1.msra.mxu0 0.0
        %607 = vmatprep.subr.mxu0 0.0
        %608 = vmatpush1.msra.mxu0 0.0
        %609 = vmatprep.subr.mxu0 0.0
        %610 = vmatpush1.msra.mxu0 0.0
        %611 = vmatprep.subr.mxu0 0.0
        %612 = vmatpush1.msra.mxu0 0.0
        %613 = vmatprep.subr.mxu0 0.0
        %614 = vmatpush1.msra.mxu0 0.0
        %615 = vmatprep.subr.mxu0 0.0
        %616 = vmatpush1.msra.mxu0 0.0
        %617 = vmatprep.subr.mxu0 0.0
        %618 = vmatpush1.msra.mxu0 0.0
        %619 = vmatprep.subr.mxu0 0.0
        %620 = vmatpush1.msra.mxu0 0.0
        %621 = vmatprep.subr.mxu0 0.0
        %622 = vmatpush1.msra.mxu0 0.0
        %623 = vmatprep.subr.mxu0 0.0
        %624 = vmatpush1.msra.mxu0 0.0
        %625 = vmatprep.subr.mxu0 0.0
        %626 = vmatpush1.msra.mxu0 0.0
        %627 = vmatprep.subr.mxu0 0.0
        %628 = vmatpush1.msra.mxu0 0.0
        %629 = vmatprep.subr.mxu0 0.0
        %630 = vmatpush1.msra.mxu0 0.0
        %631 = vmatprep.subr.mxu0 0.0
        %632 = vmatpush1.msra.mxu0 0.0
        %633 = vmatprep.mubr.f32.mxu0 0.0
        %634 = vmatmul.mubr.f32.gmra.mrb[0].mxu0 %v567
        %v635 = vpop.f32.mrb[0].mxu0
        %v636 = vadd.f32 %v564, %v635
        %v637 = vpop.f32.mrb[0].mxu0
        %638 = vdwg.mxu0
        %v639 = vld [vmem:[%s8] sm:$0x1]
        %v641 = vlaneseq
        %v642 = vshrl.u32 %v641, 7
        %v643 = vsub.s32 0, %v642
        %v644 = vrot.slane %v639, %v643
        %v647 = vsel %vm485, %v465, 0
        %649 = vmatprep.subr.mxu0 0.0
        %650 = vmatpush1.msra.mxu0 %v474
        %651 = vmatprep.subr.mxu0 0.0
        %652 = vmatpush1.msra.mxu0 %v475
        %653 = vmatprep.subr.mxu0 0.0
        %654 = vmatpush1.msra.mxu0 %v476
        %655 = vmatprep.subr.mxu0 0.0
        %656 = vmatpush1.msra.mxu0 %v477
        %657 = vmatprep.subr.mxu0 0.0
        %658 = vmatpush1.msra.mxu0 0.0
        %659 = vmatprep.subr.mxu0 0.0
        %660 = vmatpush1.msra.mxu0 0.0
        %661 = vmatprep.subr.mxu0 0.0
        %662 = vmatpush1.msra.mxu0 0.0
        %663 = vmatprep.subr.mxu0 0.0
        %664 = vmatpush1.msra.mxu0 0.0
        %665 = vmatprep.subr.mxu0 0.0
        %666 = vmatpush1.msra.mxu0 0.0
        %667 = vmatprep.subr.mxu0 0.0
        %668 = vmatpush1.msra.mxu0 0.0
        %669 = vmatprep.subr.mxu0 0.0
        %670 = vmatpush1.msra.mxu0 0.0
        %671 = vmatprep.subr.mxu0 0.0
        %672 = vmatpush1.msra.mxu0 0.0
        %673 = vmatprep.subr.mxu0 0.0
        %674 = vmatpush1.msra.mxu0 0.0
        %675 = vmatprep.subr.mxu0 0.0
        %676 = vmatpush1.msra.mxu0 0.0
        %677 = vmatprep.subr.mxu0 0.0
        %678 = vmatpush1.msra.mxu0 0.0
        %679 = vmatprep.subr.mxu0 0.0
        %680 = vmatpush1.msra.mxu0 0.0
        %681 = vmatprep.subr.mxu0 0.0
        %682 = vmatpush1.msra.mxu0 0.0
        %683 = vmatprep.subr.mxu0 0.0
        %684 = vmatpush1.msra.mxu0 0.0
        %685 = vmatprep.subr.mxu0 0.0
        %686 = vmatpush1.msra.mxu0 0.0
        %687 = vmatprep.subr.mxu0 0.0
        %688 = vmatpush1.msra.mxu0 0.0
        %689 = vmatprep.subr.mxu0 0.0
        %690 = vmatpush1.msra.mxu0 0.0
        %691 = vmatprep.subr.mxu0 0.0
        %692 = vmatpush1.msra.mxu0 0.0
        %693 = vmatprep.subr.mxu0 0.0
        %694 = vmatpush1.msra.mxu0 0.0
        %695 = vmatprep.subr.mxu0 0.0
        %696 = vmatpush1.msra.mxu0 0.0
        %697 = vmatprep.subr.mxu0 0.0
        %698 = vmatpush1.msra.mxu0 0.0
        %699 = vmatprep.subr.mxu0 0.0
        %700 = vmatpush1.msra.mxu0 0.0
        %701 = vmatprep.subr.mxu0 0.0
        %702 = vmatpush1.msra.mxu0 0.0
        %703 = vmatprep.subr.mxu0 0.0
        %704 = vmatpush1.msra.mxu0 0.0
        %705 = vmatprep.subr.mxu0 0.0
        %706 = vmatpush1.msra.mxu0 0.0
        %707 = vmatprep.subr.mxu0 0.0
        %708 = vmatpush1.msra.mxu0 0.0
        %709 = vmatprep.subr.mxu0 0.0
        %710 = vmatpush1.msra.mxu0 0.0
        %711 = vmatprep.subr.mxu0 0.0
        %712 = vmatpush1.msra.mxu0 0.0
        %713 = vmatprep.mubr.f32.mxu0 0.0
        %714 = vmatmul.mubr.f32.gmra.mrb[0].mxu0 %v647
        %v715 = vpop.f32.mrb[0].mxu0
        %v716 = vadd.f32 %v644, %v715
        %v717 = vpop.f32.mrb[0].mxu0
        %718 = vdwg.mxu0
        %v719 = vmul.f32 %v556, 0.25
        %vm720 = vcmask 130048
        %v722 = vsel %vm720, %v719, 0
        %v725 = vsel %vm720, %v636, 0
        %727 = vmatprep.subr.mxu0 0.0
        %728 = vmatpush1.xpose.msra.mxu0 %v725
        %729 = vmatprep.subr.mxu0 0.0
        %730 = vmatpush1.xpose.msra.mxu0 0.0
        %731 = vmatprep.subr.mxu0 0.0
        %732 = vmatpush1.xpose.msra.mxu0 0.0
        %733 = vmatprep.subr.mxu0 0.0
        %734 = vmatpush1.xpose.msra.mxu0 0.0
        %735 = vmatprep.subr.mxu0 0.0
        %736 = vmatpush1.xpose.msra.mxu0 0.0
        %737 = vmatprep.subr.mxu0 0.0
        %738 = vmatpush1.xpose.msra.mxu0 0.0
        %739 = vmatprep.subr.mxu0 0.0
        %740 = vmatpush1.xpose.msra.mxu0 0.0
        %741 = vmatprep.subr.mxu0 0.0
        %742 = vmatpush1.xpose.msra.mxu0 0.0
        %743 = vmatprep.subr.mxu0 0.0
        %744 = vmatpush1.xpose.msra.mxu0 0.0
        %745 = vmatprep.subr.mxu0 0.0
        %746 = vmatpush1.xpose.msra.mxu0 0.0
        %747 = vmatprep.subr.mxu0 0.0
        %748 = vmatpush1.xpose.msra.mxu0 0.0
        %749 = vmatprep.subr.mxu0 0.0
        %750 = vmatpush1.xpose.msra.mxu0 0.0
        %751 = vmatprep.subr.mxu0 0.0
        %752 = vmatpush1.xpose.msra.mxu0 0.0
        %753 = vmatprep.subr.mxu0 0.0
        %754 = vmatpush1.xpose.msra.mxu0 0.0
        %755 = vmatprep.subr.mxu0 0.0
        %756 = vmatpush1.xpose.msra.mxu0 0.0
        %757 = vmatprep.subr.mxu0 0.0
        %758 = vmatpush1.xpose.msra.mxu0 0.0
        %759 = vmatprep.subr.mxu0 0.0
        %760 = vmatpush1.xpose.msra.mxu0 0.0
        %761 = vmatprep.subr.mxu0 0.0
        %762 = vmatpush1.xpose.msra.mxu0 0.0
        %763 = vmatprep.subr.mxu0 0.0
        %764 = vmatpush1.xpose.msra.mxu0 0.0
        %765 = vmatprep.subr.mxu0 0.0
        %766 = vmatpush1.xpose.msra.mxu0 0.0
        %767 = vmatprep.subr.mxu0 0.0
        %768 = vmatpush1.xpose.msra.mxu0 0.0
        %769 = vmatprep.subr.mxu0 0.0
        %770 = vmatpush1.xpose.msra.mxu0 0.0
        %771 = vmatprep.subr.mxu0 0.0
        %772 = vmatpush1.xpose.msra.mxu0 0.0
        %773 = vmatprep.subr.mxu0 0.0
        %774 = vmatpush1.xpose.msra.mxu0 0.0
        %775 = vmatprep.subr.mxu0 0.0
        %776 = vmatpush1.xpose.msra.mxu0 0.0
        %777 = vmatprep.subr.mxu0 0.0
        %778 = vmatpush1.xpose.msra.mxu0 0.0
        %779 = vmatprep.subr.mxu0 0.0
        %780 = vmatpush1.xpose.msra.mxu0 0.0
        %781 = vmatprep.subr.mxu0 0.0
        %782 = vmatpush1.xpose.msra.mxu0 0.0
        %783 = vmatprep.subr.mxu0 0.0
        %784 = vmatpush1.xpose.msra.mxu0 0.0
        %785 = vmatprep.subr.mxu0 0.0
        %786 = vmatpush1.xpose.msra.mxu0 0.0
        %787 = vmatprep.subr.mxu0 0.0
        %788 = vmatpush1.xpose.msra.mxu0 0.0
        %789 = vmatprep.subr.mxu0 0.0
        %790 = vmatpush1.xpose.msra.mxu0 0.0
        %791 = vmatprep.mubr.f32.mxu0 0.0
        %792 = vmatmul.mubr.f32.gmra.mrb[0].mxu0 %v722
        %v793 = vpop.f32.mrb[0].mxu0
        %v794 = vadd.f32 0.0, %v793
        %v795 = vpop.f32.mrb[0].mxu0
        %796 = vdwg.mxu0
        %vm797 = vcmask 64512
        %v798 = vsel %vm797, %v794, -inf
        %799 = vmax.xlane.f32.xlu0 %v798
        %v800 = vpop.xlane.xlu0 %799
        %v801 = vsub.f32 %v794, %v800
        %v802 = vmul.f32 %v801, 1.442695
        %v803 = vpow.pop %v802
        %v804 = vsel %vm797, %v803, 0.0
        %805 = vadd.xlane.f32.xlu0 %v804
        %v806 = vpop.xlane.xlu0 %805
        %v807 = vrcp.pop %v806
        %v808 = vmul.f32 %v803, %v807
        %v810 = vsel %vm797, %v808, 0
        %812 = vmatprep.subr.mxu0 0.0
        %813 = vmatpush1.msra.mxu0 %v716
        %814 = vmatprep.subr.mxu0 0.0
        %815 = vmatpush1.msra.mxu0 0.0
        %816 = vmatprep.subr.mxu0 0.0
        %817 = vmatpush1.msra.mxu0 0.0
        %818 = vmatprep.subr.mxu0 0.0
        %819 = vmatpush1.msra.mxu0 0.0
        %820 = vmatprep.subr.mxu0 0.0
        %821 = vmatpush1.msra.mxu0 0.0
        %822 = vmatprep.subr.mxu0 0.0
        %823 = vmatpush1.msra.mxu0 0.0
        %824 = vmatprep.subr.mxu0 0.0
        %825 = vmatpush1.msra.mxu0 0.0
        %826 = vmatprep.subr.mxu0 0.0
        %827 = vmatpush1.msra.mxu0 0.0
        %828 = vmatprep.subr.mxu0 0.0
        %829 = vmatpush1.msra.mxu0 0.0
        %830 = vmatprep.subr.mxu0 0.0
        %831 = vmatpush1.msra.mxu0 0.0
        %832 = vmatprep.subr.mxu0 0.0
        %833 = vmatpush1.msra.mxu0 0.0
        %834 = vmatprep.subr.mxu0 0.0
        %835 = vmatpush1.msra.mxu0 0.0
        %836 = vmatprep.subr.mxu0 0.0
        %837 = vmatpush1.msra.mxu0 0.0
        %838 = vmatprep.subr.mxu0 0.0
        %839 = vmatpush1.msra.mxu0 0.0
        %840 = vmatprep.subr.mxu0 0.0
        %841 = vmatpush1.msra.mxu0 0.0
        %842 = vmatprep.subr.mxu0 0.0
        %843 = vmatpush1.msra.mxu0 0.0
        %844 = vmatprep.subr.mxu0 0.0
        %845 = vmatpush1.msra.mxu0 0.0
        %846 = vmatprep.subr.mxu0 0.0
        %847 = vmatpush1.msra.mxu0 0.0
        %848 = vmatprep.subr.mxu0 0.0
        %849 = vmatpush1.msra.mxu0 0.0
        %850 = vmatprep.subr.mxu0 0.0
        %851 = vmatpush1.msra.mxu0 0.0
        %852 = vmatprep.subr.mxu0 0.0
        %853 = vmatpush1.msra.mxu0 0.0
        %854 = vmatprep.subr.mxu0 0.0
        %855 = vmatpush1.msra.mxu0 0.0
        %856 = vmatprep.subr.mxu0 0.0
        %857 = vmatpush1.msra.mxu0 0.0
        %858 = vmatprep.subr.mxu0 0.0
        %859 = vmatpush1.msra.mxu0 0.0
        %860 = vmatprep.subr.mxu0 0.0
        %861 = vmatpush1.msra.mxu0 0.0
        %862 = vmatprep.subr.mxu0 0.0
        %863 = vmatpush1.msra.mxu0 0.0
        %864 = vmatprep.subr.mxu0 0.0
        %865 = vmatpush1.msra.mxu0 0.0
        %866 = vmatprep.subr.mxu0 0.0
        %867 = vmatpush1.msra.mxu0 0.0
        %868 = vmatprep.subr.mxu0 0.0
        %869 = vmatpush1.msra.mxu0 0.0
        %870 = vmatprep.subr.mxu0 0.0
        %871 = vmatpush1.msra.mxu0 0.0
        %872 = vmatprep.subr.mxu0 0.0
        %873 = vmatpush1.msra.mxu0 0.0
        %874 = vmatprep.subr.mxu0 0.0
        %875 = vmatpush1.msra.mxu0 0.0
        %876 = vmatprep.mubr.f32.mxu0 0.0
        %877 = vmatmul.mubr.f32.gmra.mrb[0].mxu0 %v810
        %v878 = vpop.f32.mrb[0].mxu0
        %v879 = vadd.f32 0.0, %v878
        %v880 = vpop.f32.mrb[0].mxu0
        %881 = vdwg.mxu0
        %882 = vrot.lane.b32.xlu0 %v719, 112
        %v883 = vpop.permute.xlu0 %882
        %884 = vrot.lane.b32.xlu0 %v636, 112
        %v885 = vpop.permute.xlu0 %884
        %v886 = vsel %vm720, %v883, 0
        %v888 = vsel %vm720, %v885, 0
        %890 = vmatprep.subr.mxu0 0.0
        %891 = vmatpush1.xpose.msra.mxu0 %v888
        %892 = vmatprep.subr.mxu0 0.0
        %893 = vmatpush1.xpose.msra.mxu0 0.0
        %894 = vmatprep.subr.mxu0 0.0
        %895 = vmatpush1.xpose.msra.mxu0 0.0
        %896 = vmatprep.subr.mxu0 0.0
        %897 = vmatpush1.xpose.msra.mxu0 0.0
        %898 = vmatprep.subr.mxu0 0.0
        %899 = vmatpush1.xpose.msra.mxu0 0.0
        %900 = vmatprep.subr.mxu0 0.0
        %901 = vmatpush1.xpose.msra.mxu0 0.0
        %902 = vmatprep.subr.mxu0 0.0
        %903 = vmatpush1.xpose.msra.mxu0 0.0
        %904 = vmatprep.subr.mxu0 0.0
        %905 = vmatpush1.xpose.msra.mxu0 0.0
        %906 = vmatprep.subr.mxu0 0.0
        %907 = vmatpush1.xpose.msra.mxu0 0.0
        %908 = vmatprep.subr.mxu0 0.0
        %909 = vmatpush1.xpose.msra.mxu0 0.0
        %910 = vmatprep.subr.mxu0 0.0
        %911 = vmatpush1.xpose.msra.mxu0 0.0
        %912 = vmatprep.subr.mxu0 0.0
        %913 = vmatpush1.xpose.msra.mxu0 0.0
        %914 = vmatprep.subr.mxu0 0.0
        %915 = vmatpush1.xpose.msra.mxu0 0.0
        %916 = vmatprep.subr.mxu0 0.0
        %917 = vmatpush1.xpose.msra.mxu0 0.0
        %918 = vmatprep.subr.mxu0 0.0
        %919 = vmatpush1.xpose.msra.mxu0 0.0
        %920 = vmatprep.subr.mxu0 0.0
        %921 = vmatpush1.xpose.msra.mxu0 0.0
        %922 = vmatprep.subr.mxu0 0.0
        %923 = vmatpush1.xpose.msra.mxu0 0.0
        %924 = vmatprep.subr.mxu0 0.0
        %925 = vmatpush1.xpose.msra.mxu0 0.0
        %926 = vmatprep.subr.mxu0 0.0
        %927 = vmatpush1.xpose.msra.mxu0 0.0
        %928 = vmatprep.subr.mxu0 0.0
        %929 = vmatpush1.xpose.msra.mxu0 0.0
        %930 = vmatprep.subr.mxu0 0.0
        %931 = vmatpush1.xpose.msra.mxu0 0.0
        %932 = vmatprep.subr.mxu0 0.0
        %933 = vmatpush1.xpose.msra.mxu0 0.0
        %934 = vmatprep.subr.mxu0 0.0
        %935 = vmatpush1.xpose.msra.mxu0 0.0
        %936 = vmatprep.subr.mxu0 0.0
        %937 = vmatpush1.xpose.msra.mxu0 0.0
        %938 = vmatprep.subr.mxu0 0.0
        %939 = vmatpush1.xpose.msra.mxu0 0.0
        %940 = vmatprep.subr.mxu0 0.0
        %941 = vmatpush1.xpose.msra.mxu0 0.0
        %942 = vmatprep.subr.mxu0 0.0
        %943 = vmatpush1.xpose.msra.mxu0 0.0
        %944 = vmatprep.subr.mxu0 0.0
        %945 = vmatpush1.xpose.msra.mxu0 0.0
        %946 = vmatprep.subr.mxu0 0.0
        %947 = vmatpush1.xpose.msra.mxu0 0.0
        %948 = vmatprep.subr.mxu0 0.0
        %949 = vmatpush1.xpose.msra.mxu0 0.0
        %950 = vmatprep.subr.mxu0 0.0
        %951 = vmatpush1.xpose.msra.mxu0 0.0
        %952 = vmatprep.subr.mxu0 0.0
        %953 = vmatpush1.xpose.msra.mxu0 0.0
        %954 = vmatprep.mubr.f32.mxu0 0.0
        %955 = vmatmul.mubr.f32.gmra.mrb[0].mxu0 %v886
        %v956 = vpop.f32.mrb[0].mxu0
        %v957 = vadd.f32 0.0, %v956
        %v958 = vpop.f32.mrb[0].mxu0
        %959 = vdwg.mxu0
        %v960 = vsel %vm797, %v957, -inf
        %961 = vmax.xlane.f32.xlu0 %v960
        %v962 = vpop.xlane.xlu0 %961
        %v963 = vsub.f32 %v957, %v962
        %v964 = vmul.f32 %v963, 1.442695
        %v965 = vpow.pop %v964
        %v966 = vsel %vm797, %v965, 0.0
        %967 = vadd.xlane.f32.xlu0 %v966
        %v968 = vpop.xlane.xlu0 %967
        %v969 = vrcp.pop %v968
        %v970 = vmul.f32 %v965, %v969
        %972 = vrot.lane.b32.xlu0 %v716, 112
        %v973 = vpop.permute.xlu0 %972
        %v976 = vsel %vm797, %v970, 0
        %978 = vmatprep.subr.mxu0 0.0
        %979 = vmatpush1.msra.mxu0 %v973
        %980 = vmatprep.subr.mxu0 0.0
        %981 = vmatpush1.msra.mxu0 0.0
        %982 = vmatprep.subr.mxu0 0.0
        %983 = vmatpush1.msra.mxu0 0.0
        %984 = vmatprep.subr.mxu0 0.0
        %985 = vmatpush1.msra.mxu0 0.0
        %986 = vmatprep.subr.mxu0 0.0
        %987 = vmatpush1.msra.mxu0 0.0
        %988 = vmatprep.subr.mxu0 0.0
        %989 = vmatpush1.msra.mxu0 0.0
        %990 = vmatprep.subr.mxu0 0.0
        %991 = vmatpush1.msra.mxu0 0.0
        %992 = vmatprep.subr.mxu0 0.0
        %993 = vmatpush1.msra.mxu0 0.0
        %994 = vmatprep.subr.mxu0 0.0
        %995 = vmatpush1.msra.mxu0 0.0
        %996 = vmatprep.subr.mxu0 0.0
        %997 = vmatpush1.msra.mxu0 0.0
        %998 = vmatprep.subr.mxu0 0.0
        %999 = vmatpush1.msra.mxu0 0.0
        %1000 = vmatprep.subr.mxu0 0.0
        %1001 = vmatpush1.msra.mxu0 0.0
        %1002 = vmatprep.subr.mxu0 0.0
        %1003 = vmatpush1.msra.mxu0 0.0
        %1004 = vmatprep.subr.mxu0 0.0
        %1005 = vmatpush1.msra.mxu0 0.0
        %1006 = vmatprep.subr.mxu0 0.0
        %1007 = vmatpush1.msra.mxu0 0.0
        %1008 = vmatprep.subr.mxu0 0.0
        %1009 = vmatpush1.msra.mxu0 0.0
        %1010 = vmatprep.subr.mxu0 0.0
        %1011 = vmatpush1.msra.mxu0 0.0
        %1012 = vmatprep.subr.mxu0 0.0
        %1013 = vmatpush1.msra.mxu0 0.0
        %1014 = vmatprep.subr.mxu0 0.0
        %1015 = vmatpush1.msra.mxu0 0.0
        %1016 = vmatprep.subr.mxu0 0.0
        %1017 = vmatpush1.msra.mxu0 0.0
        %1018 = vmatprep.subr.mxu0 0.0
        %1019 = vmatpush1.msra.mxu0 0.0
        %1020 = vmatprep.subr.mxu0 0.0
        %1021 = vmatpush1.msra.mxu0 0.0
        %1022 = vmatprep.subr.mxu0 0.0
        %1023 = vmatpush1.msra.mxu0 0.0
        %1024 = vmatprep.subr.mxu0 0.0
        %1025 = vmatpush1.msra.mxu0 0.0
        %1026 = vmatprep.subr.mxu0 0.0
        %1027 = vmatpush1.msra.mxu0 0.0
        %1028 = vmatprep.subr.mxu0 0.0
        %1029 = vmatpush1.msra.mxu0 0.0
        %1030 = vmatprep.subr.mxu0 0.0
        %1031 = vmatpush1.msra.mxu0 0.0
        %1032 = vmatprep.subr.mxu0 0.0
        %1033 = vmatpush1.msra.mxu0 0.0
        %1034 = vmatprep.subr.mxu0 0.0
        %1035 = vmatpush1.msra.mxu0 0.0
        %1036 = vmatprep.subr.mxu0 0.0
        %1037 = vmatpush1.msra.mxu0 0.0
        %1038 = vmatprep.subr.mxu0 0.0
        %1039 = vmatpush1.msra.mxu0 0.0
        %1040 = vmatprep.subr.mxu0 0.0
        %1041 = vmatpush1.msra.mxu0 0.0
        %1042 = vmatprep.mubr.f32.mxu0 0.0
        %1043 = vmatmul.mubr.f32.gmra.mrb[0].mxu0 %v976
        %v1044 = vpop.f32.mrb[0].mxu0
        %v1045 = vadd.f32 0.0, %v1044
        %v1046 = vpop.f32.mrb[0].mxu0
        %1047 = vdwg.mxu0
        %1048 = vrot.lane.b32.xlu0 %v719, 96
        %v1049 = vpop.permute.xlu0 %1048
        %1050 = vrot.lane.b32.xlu0 %v636, 96
        %v1051 = vpop.permute.xlu0 %1050
        %v1052 = vsel %vm720, %v1049, 0
        %v1054 = vsel %vm720, %v1051, 0
        %1056 = vmatprep.subr.mxu0 0.0
        %1057 = vmatpush1.xpose.msra.mxu0 %v1054
        %1058 = vmatprep.subr.mxu0 0.0
        %1059 = vmatpush1.xpose.msra.mxu0 0.0
        %1060 = vmatprep.subr.mxu0 0.0
        %1061 = vmatpush1.xpose.msra.mxu0 0.0
        %1062 = vmatprep.subr.mxu0 0.0
        %1063 = vmatpush1.xpose.msra.mxu0 0.0
        %1064 = vmatprep.subr.mxu0 0.0
        %1065 = vmatpush1.xpose.msra.mxu0 0.0
        %1066 = vmatprep.subr.mxu0 0.0
        %1067 = vmatpush1.xpose.msra.mxu0 0.0
        %1068 = vmatprep.subr.mxu0 0.0
        %1069 = vmatpush1.xpose.msra.mxu0 0.0
        %1070 = vmatprep.subr.mxu0 0.0
        %1071 = vmatpush1.xpose.msra.mxu0 0.0
        %1072 = vmatprep.subr.mxu0 0.0
        %1073 = vmatpush1.xpose.msra.mxu0 0.0
        %1074 = vmatprep.subr.mxu0 0.0
        %1075 = vmatpush1.xpose.msra.mxu0 0.0
        %1076 = vmatprep.subr.mxu0 0.0
        %1077 = vmatpush1.xpose.msra.mxu0 0.0
        %1078 = vmatprep.subr.mxu0 0.0
        %1079 = vmatpush1.xpose.msra.mxu0 0.0
        %1080 = vmatprep.subr.mxu0 0.0
        %1081 = vmatpush1.xpose.msra.mxu0 0.0
        %1082 = vmatprep.subr.mxu0 0.0
        %1083 = vmatpush1.xpose.msra.mxu0 0.0
        %1084 = vmatprep.subr.mxu0 0.0
        %1085 = vmatpush1.xpose.msra.mxu0 0.0
        %1086 = vmatprep.subr.mxu0 0.0
        %1087 = vmatpush1.xpose.msra.mxu0 0.0
        %1088 = vmatprep.subr.mxu0 0.0
        %1089 = vmatpush1.xpose.msra.mxu0 0.0
        %1090 = vmatprep.subr.mxu0 0.0
        %1091 = vmatpush1.xpose.msra.mxu0 0.0
        %1092 = vmatprep.subr.mxu0 0.0
        %1093 = vmatpush1.xpose.msra.mxu0 0.0
        %1094 = vmatprep.subr.mxu0 0.0
        %1095 = vmatpush1.xpose.msra.mxu0 0.0
        %1096 = vmatprep.subr.mxu0 0.0
        %1097 = vmatpush1.xpose.msra.mxu0 0.0
        %1098 = vmatprep.subr.mxu0 0.0
        %1099 = vmatpush1.xpose.msra.mxu0 0.0
        %1100 = vmatprep.subr.mxu0 0.0
        %1101 = vmatpush1.xpose.msra.mxu0 0.0
        %1102 = vmatprep.subr.mxu0 0.0
        %1103 = vmatpush1.xpose.msra.mxu0 0.0
        %1104 = vmatprep.subr.mxu0 0.0
        %1105 = vmatpush1.xpose.msra.mxu0 0.0
        %1106 = vmatprep.subr.mxu0 0.0
        %1107 = vmatpush1.xpose.msra.mxu0 0.0
        %1108 = vmatprep.subr.mxu0 0.0
        %1109 = vmatpush1.xpose.msra.mxu0 0.0
        %1110 = vmatprep.subr.mxu0 0.0
        %1111 = vmatpush1.xpose.msra.mxu0 0.0
        %1112 = vmatprep.subr.mxu0 0.0
        %1113 = vmatpush1.xpose.msra.mxu0 0.0
        %1114 = vmatprep.subr.mxu0 0.0
        %1115 = vmatpush1.xpose.msra.mxu0 0.0
        %1116 = vmatprep.subr.mxu0 0.0
        %1117 = vmatpush1.xpose.msra.mxu0 0.0
        %1118 = vmatprep.subr.mxu0 0.0
        %1119 = vmatpush1.xpose.msra.mxu0 0.0
        %1120 = vmatprep.mubr.f32.mxu0 0.0
        %1121 = vmatmul.mubr.f32.gmra.mrb[0].mxu0 %v1052
        %v1122 = vpop.f32.mrb[0].mxu0
        %v1123 = vadd.f32 0.0, %v1122
        %v1124 = vpop.f32.mrb[0].mxu0
        %1125 = vdwg.mxu0
        %v1126 = vsel %vm797, %v1123, -inf
        %1127 = vmax.xlane.f32.xlu0 %v1126
        %v1128 = vpop.xlane.xlu0 %1127
        %v1129 = vsub.f32 %v1123, %v1128
        %v1130 = vmul.f32 %v1129, 1.442695
        %v1131 = vpow.pop %v1130
        %v1132 = vsel %vm797, %v1131, 0.0
        %1133 = vadd.xlane.f32.xlu0 %v1132
        %v1134 = vpop.xlane.xlu0 %1133
        %v1135 = vrcp.pop %v1134
        %v1136 = vmul.f32 %v1131, %v1135
        %1137 = vrot.lane.b32.xlu0 %v716, 96
        %v1138 = vpop.permute.xlu0 %1137
        %v1141 = vsel %vm797, %v1136, 0
        %1143 = vmatprep.subr.mxu0 0.0
        %1144 = vmatpush1.msra.mxu0 %v1138
        %1145 = vmatprep.subr.mxu0 0.0
        %1146 = vmatpush1.msra.mxu0 0.0
        %1147 = vmatprep.subr.mxu0 0.0
        %1148 = vmatpush1.msra.mxu0 0.0
        %1149 = vmatprep.subr.mxu0 0.0
        %1150 = vmatpush1.msra.mxu0 0.0
        %1151 = vmatprep.subr.mxu0 0.0
        %1152 = vmatpush1.msra.mxu0 0.0
        %1153 = vmatprep.subr.mxu0 0.0
        %1154 = vmatpush1.msra.mxu0 0.0
        %1155 = vmatprep.subr.mxu0 0.0
        %1156 = vmatpush1.msra.mxu0 0.0
        %1157 = vmatprep.subr.mxu0 0.0
        %1158 = vmatpush1.msra.mxu0 0.0
        %1159 = vmatprep.subr.mxu0 0.0
        %1160 = vmatpush1.msra.mxu0 0.0
        %1161 = vmatprep.subr.mxu0 0.0
        %1162 = vmatpush1.msra.mxu0 0.0
        %1163 = vmatprep.subr.mxu0 0.0
        %1164 = vmatpush1.msra.mxu0 0.0
        %1165 = vmatprep.subr.mxu0 0.0
        %1166 = vmatpush1.msra.mxu0 0.0
        %1167 = vmatprep.subr.mxu0 0.0
        %1168 = vmatpush1.msra.mxu0 0.0
        %1169 = vmatprep.subr.mxu0 0.0
        %1170 = vmatpush1.msra.mxu0 0.0
        %1171 = vmatprep.subr.mxu0 0.0
        %1172 = vmatpush1.msra.mxu0 0.0
        %1173 = vmatprep.subr.mxu0 0.0
        %1174 = vmatpush1.msra.mxu0 0.0
        %1175 = vmatprep.subr.mxu0 0.0
        %1176 = vmatpush1.msra.mxu0 0.0
        %1177 = vmatprep.subr.mxu0 0.0
        %1178 = vmatpush1.msra.mxu0 0.0
        %1179 = vmatprep.subr.mxu0 0.0
        %1180 = vmatpush1.msra.mxu0 0.0
        %1181 = vmatprep.subr.mxu0 0.0
        %1182 = vmatpush1.msra.mxu0 0.0
        %1183 = vmatprep.subr.mxu0 0.0
        %1184 = vmatpush1.msra.mxu0 0.0
        %1185 = vmatprep.subr.mxu0 0.0
        %1186 = vmatpush1.msra.mxu0 0.0
        %1187 = vmatprep.subr.mxu0 0.0
        %1188 = vmatpush1.msra.mxu0 0.0
        %1189 = vmatprep.subr.mxu0 0.0
        %1190 = vmatpush1.msra.mxu0 0.0
        %1191 = vmatprep.subr.mxu0 0.0
        %1192 = vmatpush1.msra.mxu0 0.0
        %1193 = vmatprep.subr.mxu0 0.0
        %1194 = vmatpush1.msra.mxu0 0.0
        %1195 = vmatprep.subr.mxu0 0.0
        %1196 = vmatpush1.msra.mxu0 0.0
        %1197 = vmatprep.subr.mxu0 0.0
        %1198 = vmatpush1.msra.mxu0 0.0
        %1199 = vmatprep.subr.mxu0 0.0
        %1200 = vmatpush1.msra.mxu0 0.0
        %1201 = vmatprep.subr.mxu0 0.0
        %1202 = vmatpush1.msra.mxu0 0.0
        %1203 = vmatprep.subr.mxu0 0.0
        %1204 = vmatpush1.msra.mxu0 0.0
        %1205 = vmatprep.subr.mxu0 0.0
        %1206 = vmatpush1.msra.mxu0 0.0
        %1207 = vmatprep.mubr.f32.mxu0 0.0
        %1208 = vmatmul.mubr.f32.gmra.mrb[0].mxu0 %v1141
        %v1209 = vpop.f32.mrb[0].mxu0
        %v1210 = vadd.f32 0.0, %v1209
        %v1211 = vpop.f32.mrb[0].mxu0
        %1212 = vdwg.mxu0
        %1213 = vrot.lane.b32.xlu0 %v719, 80
        %v1214 = vpop.permute.xlu0 %1213
        %1215 = vrot.lane.b32.xlu0 %v636, 80
        %v1216 = vpop.permute.xlu0 %1215
        %v1217 = vsel %vm720, %v1214, 0
        %v1219 = vsel %vm720, %v1216, 0
        %1221 = vmatprep.subr.mxu0 0.0
        %1222 = vmatpush1.xpose.msra.mxu0 %v1219
        %1223 = vmatprep.subr.mxu0 0.0
        %1224 = vmatpush1.xpose.msra.mxu0 0.0
        %1225 = vmatprep.subr.mxu0 0.0
        %1226 = vmatpush1.xpose.msra.mxu0 0.0
        %1227 = vmatprep.subr.mxu0 0.0
        %1228 = vmatpush1.xpose.msra.mxu0 0.0
        %1229 = vmatprep.subr.mxu0 0.0
        %1230 = vmatpush1.xpose.msra.mxu0 0.0
        %1231 = vmatprep.subr.mxu0 0.0
        %1232 = vmatpush1.xpose.msra.mxu0 0.0
        %1233 = vmatprep.subr.mxu0 0.0
        %1234 = vmatpush1.xpose.msra.mxu0 0.0
        %1235 = vmatprep.subr.mxu0 0.0
        %1236 = vmatpush1.xpose.msra.mxu0 0.0
        %1237 = vmatprep.subr.mxu0 0.0
        %1238 = vmatpush1.xpose.msra.mxu0 0.0
        %1239 = vmatprep.subr.mxu0 0.0
        %1240 = vmatpush1.xpose.msra.mxu0 0.0
        %1241 = vmatprep.subr.mxu0 0.0
        %1242 = vmatpush1.xpose.msra.mxu0 0.0
        %1243 = vmatprep.subr.mxu0 0.0
        %1244 = vmatpush1.xpose.msra.mxu0 0.0
        %1245 = vmatprep.subr.mxu0 0.0
        %1246 = vmatpush1.xpose.msra.mxu0 0.0
        %1247 = vmatprep.subr.mxu0 0.0
        %1248 = vmatpush1.xpose.msra.mxu0 0.0
        %1249 = vmatprep.subr.mxu0 0.0
        %1250 = vmatpush1.xpose.msra.mxu0 0.0
        %1251 = vmatprep.subr.mxu0 0.0
        %1252 = vmatpush1.xpose.msra.mxu0 0.0
        %1253 = vmatprep.subr.mxu0 0.0
        %1254 = vmatpush1.xpose.msra.mxu0 0.0
        %1255 = vmatprep.subr.mxu0 0.0
        %1256 = vmatpush1.xpose.msra.mxu0 0.0
        %1257 = vmatprep.subr.mxu0 0.0
        %1258 = vmatpush1.xpose.msra.mxu0 0.0
        %1259 = vmatprep.subr.mxu0 0.0
        %1260 = vmatpush1.xpose.msra.mxu0 0.0
        %1261 = vmatprep.subr.mxu0 0.0
        %1262 = vmatpush1.xpose.msra.mxu0 0.0
        %1263 = vmatprep.subr.mxu0 0.0
        %1264 = vmatpush1.xpose.msra.mxu0 0.0
        %1265 = vmatprep.subr.mxu0 0.0
        %1266 = vmatpush1.xpose.msra.mxu0 0.0
        %1267 = vmatprep.subr.mxu0 0.0
        %1268 = vmatpush1.xpose.msra.mxu0 0.0
        %1269 = vmatprep.subr.mxu0 0.0
        %1270 = vmatpush1.xpose.msra.mxu0 0.0
        %1271 = vmatprep.subr.mxu0 0.0
        %1272 = vmatpush1.xpose.msra.mxu0 0.0
        %1273 = vmatprep.subr.mxu0 0.0
        %1274 = vmatpush1.xpose.msra.mxu0 0.0
        %1275 = vmatprep.subr.mxu0 0.0
        %1276 = vmatpush1.xpose.msra.mxu0 0.0
        %1277 = vmatprep.subr.mxu0 0.0
        %1278 = vmatpush1.xpose.msra.mxu0 0.0
        %1279 = vmatprep.subr.mxu0 0.0
        %1280 = vmatpush1.xpose.msra.mxu0 0.0
        %1281 = vmatprep.subr.mxu0 0.0
        %1282 = vmatpush1.xpose.msra.mxu0 0.0
        %1283 = vmatprep.subr.mxu0 0.0
        %1284 = vmatpush1.xpose.msra.mxu0 0.0
        %1285 = vmatprep.mubr.f32.mxu0 0.0
        %1286 = vmatmul.mubr.f32.gmra.mrb[0].mxu0 %v1217
        %v1287 = vpop.f32.mrb[0].mxu0
        %v1288 = vadd.f32 0.0, %v1287
        %v1289 = vpop.f32.mrb[0].mxu0
        %1290 = vdwg.mxu0
        %v1291 = vsel %vm797, %v1288, -inf
        %1292 = vmax.xlane.f32.xlu0 %v1291
        %v1293 = vpop.xlane.xlu0 %1292
        %v1294 = vsub.f32 %v1288, %v1293
        %v1295 = vmul.f32 %v1294, 1.442695
        %v1296 = vpow.pop %v1295
        %v1297 = vsel %vm797, %v1296, 0.0
        %1298 = vadd.xlane.f32.xlu0 %v1297
        %v1299 = vpop.xlane.xlu0 %1298
        %v1300 = vrcp.pop %v1299
        %v1301 = vmul.f32 %v1296, %v1300
        %1302 = vrot.lane.b32.xlu0 %v716, 80
        %v1303 = vpop.permute.xlu0 %1302
        %v1306 = vsel %vm797, %v1301, 0
        %1308 = vmatprep.subr.mxu0 0.0
        %1309 = vmatpush1.msra.mxu0 %v1303
        %1310 = vmatprep.subr.mxu0 0.0
        %1311 = vmatpush1.msra.mxu0 0.0
        %1312 = vmatprep.subr.mxu0 0.0
        %1313 = vmatpush1.msra.mxu0 0.0
        %1314 = vmatprep.subr.mxu0 0.0
        %1315 = vmatpush1.msra.mxu0 0.0
        %1316 = vmatprep.subr.mxu0 0.0
        %1317 = vmatpush1.msra.mxu0 0.0
        %1318 = vmatprep.subr.mxu0 0.0
        %1319 = vmatpush1.msra.mxu0 0.0
        %1320 = vmatprep.subr.mxu0 0.0
        %1321 = vmatpush1.msra.mxu0 0.0
        %1322 = vmatprep.subr.mxu0 0.0
        %1323 = vmatpush1.msra.mxu0 0.0
        %1324 = vmatprep.subr.mxu0 0.0
        %1325 = vmatpush1.msra.mxu0 0.0
        %1326 = vmatprep.subr.mxu0 0.0
        %1327 = vmatpush1.msra.mxu0 0.0
        %1328 = vmatprep.subr.mxu0 0.0
        %1329 = vmatpush1.msra.mxu0 0.0
        %1330 = vmatprep.subr.mxu0 0.0
        %1331 = vmatpush1.msra.mxu0 0.0
        %1332 = vmatprep.subr.mxu0 0.0
        %1333 = vmatpush1.msra.mxu0 0.0
        %1334 = vmatprep.subr.mxu0 0.0
        %1335 = vmatpush1.msra.mxu0 0.0
        %1336 = vmatprep.subr.mxu0 0.0
        %1337 = vmatpush1.msra.mxu0 0.0
        %1338 = vmatprep.subr.mxu0 0.0
        %1339 = vmatpush1.msra.mxu0 0.0
        %1340 = vmatprep.subr.mxu0 0.0
        %1341 = vmatpush1.msra.mxu0 0.0
        %1342 = vmatprep.subr.mxu0 0.0
        %1343 = vmatpush1.msra.mxu0 0.0
        %1344 = vmatprep.subr.mxu0 0.0
        %1345 = vmatpush1.msra.mxu0 0.0
        %1346 = vmatprep.subr.mxu0 0.0
        %1347 = vmatpush1.msra.mxu0 0.0
        %1348 = vmatprep.subr.mxu0 0.0
        %1349 = vmatpush1.msra.mxu0 0.0
        %1350 = vmatprep.subr.mxu0 0.0
        %1351 = vmatpush1.msra.mxu0 0.0
        %1352 = vmatprep.subr.mxu0 0.0
        %1353 = vmatpush1.msra.mxu0 0.0
        %1354 = vmatprep.subr.mxu0 0.0
        %1355 = vmatpush1.msra.mxu0 0.0
        %1356 = vmatprep.subr.mxu0 0.0
        %1357 = vmatpush1.msra.mxu0 0.0
        %1358 = vmatprep.subr.mxu0 0.0
        %1359 = vmatpush1.msra.mxu0 0.0
        %1360 = vmatprep.subr.mxu0 0.0
        %1361 = vmatpush1.msra.mxu0 0.0
        %1362 = vmatprep.subr.mxu0 0.0
        %1363 = vmatpush1.msra.mxu0 0.0
        %1364 = vmatprep.subr.mxu0 0.0
        %1365 = vmatpush1.msra.mxu0 0.0
        %1366 = vmatprep.subr.mxu0 0.0
        %1367 = vmatpush1.msra.mxu0 0.0
        %1368 = vmatprep.subr.mxu0 0.0
        %1369 = vmatpush1.msra.mxu0 0.0
        %1370 = vmatprep.subr.mxu0 0.0
        %1371 = vmatpush1.msra.mxu0 0.0
        %1372 = vmatprep.mubr.f32.mxu0 0.0
        %1373 = vmatmul.mubr.f32.gmra.mrb[0].mxu0 %v1306
        %v1374 = vpop.f32.mrb[0].mxu0
        %v1375 = vadd.f32 0.0, %v1374
        %v1376 = vpop.f32.mrb[0].mxu0
        %1377 = vdwg.mxu0
        %1379 = vrot.lane.b32.xlu0 %v1045, 16
        %v1380 = vpop.permute.xlu0 %1379
        %1383 = vrot.lane.b32.xlu0 %v1210, 32
        %v1384 = vpop.permute.xlu0 %1383
        %1387 = vrot.lane.b32.xlu0 %v1375, 48
        %v1388 = vpop.permute.xlu0 %1387
        %v1390 = vsel %vm720, %v879, %v1380
        %v1391 = vsel %vm485, %v1390, %v1384
        %vm1392 = vcmask 392192
        %v1393 = vsel %vm1392, %v1391, %v1388
        %vm1394 = vcmask 523264
        %1395 = vst.msk [vmem:[%s462] sm:$0xff] %vm1394, %v1393
        %s1396 = sand.u32 %s243, 1
        %s1397 = scalar_lea.sflag [#allocation4], %s1396
        %s1398 = sand.u32 %s243, 1
        %s1399 = smul.addr %s1398, 8
        %s1400 = scalar_lea.vmem [#allocation13], %s1399
        // Predicated region
        $region81: #{tpu_custom_call.1} parent=55 // pred_check
          %p1401 = pneg %p253
        $region82: #{tpu_custom_call.1} parent=55 // pred_check_branch
          %1403 = sbr.rel (%p1401) target = $region84
        $region83: #{tpu_custom_call.1} parent=55 // pred_region
          %s1405 = ssub.s32 128, 128
          %1406 = vsyncadd %s1397, %s1405
          %s1407 = smul.addr %s31, 128
          %s1408 = scalar_lea.hbm %s9, %s1407
          %s1410 = sshll.u32 %s1400, 4
          %s1411 = int_to_ptr.vmem [resolvable:$true] %s1410
          %1413 = dma.vmem_to_hbm [thread:$0]  %s1411, 128, %s1408, %s1397
        $region84: #{tpu_custom_call.1} parent=55 // pred_fallthru
          _
      $region56: #{tpu_custom_call.1} parent=5 // pred_fallthru
        _
      %p1414 = scmp.le.s32.totalorder 2, %s26
      // Predicated region
      $region85: #{tpu_custom_call.1} parent=5 // pred_check
        %p1415 = pneg %p1414
      $region86: #{tpu_custom_call.1} parent=5 // pred_check_branch
        %1417 = sbr.rel (%p1415) target = $region88
      $region87: #{tpu_custom_call.1} parent=5 // pred_region
        %s1418 = ssub.s32 %s26, 2
        // Predicated region
        $region89: #{tpu_custom_call.1} parent=87 // pred_check
          %p1419 = pneg %p259
        $region90: #{tpu_custom_call.1} parent=87 // pred_check_branch
          %1421 = sbr.rel (%p1419) target = $region92
        $region91: #{tpu_custom_call.1} parent=87 // pred_region
          %s1422 = sand.u32 %s244, 1
          %s1423 = scalar_lea.sflag [#allocation4], %s1422
          %s1424 = sand.u32 %s244, 1
          %s1425 = smul.addr %s1424, 8
          %s1426 = scalar_lea.vmem [#allocation13], %s1425
          %1427 = dma.done %s1423, 128
        $region92: #{tpu_custom_call.1} parent=87 // pred_fallthru
          _
      $region88: #{tpu_custom_call.1} parent=5 // pred_fallthru
        _
    $region6: #{tpu_custom_call.1} parent=1 // loop_footer
      %s30 = sadd.s32 1, %s26
    $region7: #{tpu_custom_call.1} parent=1 // loop_footer_branch
      %25 = sbr.rel target = $region3
    $region8: #{tpu_custom_call.1} parent=1 // loop_exit
      _
    %1428 = vsyncpa [#allocation3], 1
    %s1429 = scalar_lea.sflag [#allocation3], 1
    %1430 = vsyncpa %s1429, 1
    %1431 = vsyncpa [#allocation6], 1
    %s1432 = scalar_lea.sflag [#allocation6], 1
    %1433 = vsyncpa %s1432, 1
    %1434 = vsyncpa [#allocation9], 1
    %1435 = vsyncpa [#allocation12], 1
    %1436 = vsyncpa [#allocation4], 1
    %s1437 = scalar_lea.sflag [#allocation4], 1
    %1438 = vsyncpa %s1437, 1

</llo_original>
